<compile_context>
chip_gen: v7x
topology: tpu7x:2x2x1
jax: 0.10.0
libtpu: 0.0.40
codegen_flags: <defaults>
</compile_context>

<pallas_src>
import numpy as np
import jax
import jax.numpy as jnp
from jax import lax
from jax.experimental import pallas as pl
from jax.experimental.pallas import tpu as pltpu


# ----------------------------------------------------------------------------- utils

def _ceil_to(x, m):
    return ((x + m - 1) // m) * m


def gen_group_inds(gt_inds):
    """Same semantics as the torch version (host-side numpy grouping)."""
    target = np.asarray(gt_inds)
    gt_label = np.unique(target)
    res = []
    for i in gt_label:
        res.append(np.argwhere(target == i).reshape(-1))
    return res


def bilinear_taps(centers, H, W):
    """Per-point 4-tap (flat_index, weight) pairs reproducing
    torch.nn.functional.grid_sample defaults: mode='bilinear', padding_mode='zeros',
    align_corners=False.  centers: (N, 2) normalized coords in [-1, 1], (x, y) order.
    Returns (idx (N, 4) int32, w (N, 4) float32)."""
    centers = np.asarray(centers, dtype=np.float32)
    gx, gy = centers[:, 0], centers[:, 1]
    xp = ((gx + 1.0) * W - 1.0) * 0.5
    yp = ((gy + 1.0) * H - 1.0) * 0.5
    x0 = np.floor(xp).astype(np.int64)
    y0 = np.floor(yp).astype(np.int64)
    x1 = x0 + 1
    y1 = y0 + 1
    wx1 = xp - x0
    wx0 = 1.0 - wx1
    wy1 = yp - y0
    wy0 = 1.0 - wy1
    idxs, ws = [], []
    for xi, yi, wv in ((x0, y0, wx0 * wy0), (x1, y0, wx1 * wy0),
                       (x0, y1, wx0 * wy1), (x1, y1, wx1 * wy1)):
        inb = (xi >= 0) & (xi < W) & (yi >= 0) & (yi < H)
        xi_c = np.clip(xi, 0, W - 1)
        yi_c = np.clip(yi, 0, H - 1)
        idxs.append((yi_c * W + xi_c).astype(np.int32))
        ws.append((wv * inb).astype(np.float32))
    return np.stack(idxs, axis=1), np.stack(ws, axis=1)


# ----------------------------------------------------------------------------- Pallas kernel

def _tag_loss_kernel(imap_ref, pred_ref, ti_ref, tw_ref, gpull_ref, gpush_ref,
                     gchan_ref, out_ref, emb_acc):
    """One (p, c) grid step == one image; inner axis k tiles the H*W contraction.

    imap_ref : (STEPS,)            i32 SMEM  scalar-prefetch image index per step (index_maps only)
    pred_ref : (1, NAP, HW_TILE)   f32 VMEM  all tag channels of the step's image (one HW tile)
    ti_ref   : (1, 5, NPAD)        i32 VMEM  rows 0..3: bilinear tap flat indices; row 4: group id
                                             (== GPAD sentinel for padded points)
    tw_ref   : (1, 4, NPAD)        f32 VMEM  rows 0..3: bilinear tap weights (0 for padded points)
    gpull_ref: (1, GPAD, 1)        f32 VMEM  per-group pull coefficient (all normalizers folded in)
    gpush_ref: (1, GPAD, 1)        f32 VMEM  per-group push coefficient
    gchan_ref: (1, GPAD, NAP)      f32 VMEM  per-group channel mask (channels of the group's call)
    out_ref  : (1, 8, 128)         f32 VMEM  per-megacore-half loss accumulator (resident)
    emb_acc  : (NAP, NPAD)         f32 VMEM  scratch accumulator for the H*W-tiled matmul
    """
    c = pl.program_id(1)
    k = pl.program_id(2)
    kt = pl.num_programs(2)

    nap, hw_tile = pred_ref.shape[1], pred_ref.shape[2]
    npad = ti_ref.shape[2]
    gpad = gchan_ref.shape[1]

    @pl.when(jnp.logical_and(c == 0, k == 0))
    def _init_out():
        out_ref[...] = jnp.zeros_like(out_ref)

    p = pred_ref[0]                          # (NAP, HW_TILE)
    ti = ti_ref[0]                           # (5, NPAD) i32
    tw = tw_ref[0]                           # (4, NPAD) f32

    # ---- grid_sample(bilinear): one-hot sampling matrix built on-chip + MXU matmul ----
    # Taps whose flat index falls outside this HW tile simply never match the iota and
    # contribute 0 here (they contribute in their own tile).
    base = k * hw_tile
    hw_iota = lax.broadcasted_iota(jnp.int32, (hw_tile, npad), 0)
    wT = jnp.where(hw_iota == (ti[0:1, :] - base), tw[0:1, :], 0.0)
    for t in range(1, 4):
        wT = wT + jnp.where(hw_iota == (ti[t:t + 1, :] - base), tw[t:t + 1, :], 0.0)

    @pl.when(k == 0)
    def _init_acc():
        emb_acc[...] = jnp.zeros_like(emb_acc)

    emb_acc[...] += jnp.dot(p, wT, preferred_element_type=jnp.float32)   # (NAP, NPAD)

    # ---- group statistics + pull/push only on the last HW tile -------------------------
    @pl.when(k == kt - 1)
    def _finish():
        embT = emb_acc[...]                                       # (NAP, NPAD)

        gid = ti[4:5, :]                                          # (1, NPAD)
        g_iota = lax.broadcasted_iota(jnp.int32, (gpad, npad), 0)
        m = (g_iota == gid).astype(jnp.float32)                   # (GPAD, NPAD)

        cnt = jnp.sum(m, axis=1, keepdims=True)                   # (GPAD, 1)
        valid = (cnt > 0.5).astype(jnp.float32)
        inv_cnt = 1.0 / jnp.maximum(cnt, 1.0)

        gchan = gchan_ref[0]                                      # (GPAD, NAP)
        gpull = gpull_ref[0]                                      # (GPAD, 1)
        gpush = gpush_ref[0]                                      # (GPAD, 1)

        # per-group, per-channel sums; gchan restricts each group to its call's channels
        msum = lax.dot_general(m, embT, (((1,), (1,)), ((), ())),
                               preferred_element_type=jnp.float32)        # (GPAD, NAP)
        tags = msum * gchan * inv_cnt                                     # (GPAD, NAP)

        # pull: reduce-then-mask (no (G, N, D) tensor).  NOTE: E[x^2] - n*mean^2 form with
        # a >=0 clamp; fine at 5e-4 tolerance (see review's precision note).
        msq = lax.dot_general(m, embT * embT, (((1,), (1,)), ((), ())),
                              preferred_element_type=jnp.float32)         # (GPAD, NAP)
        s1 = jnp.sum(msq * gchan, axis=1, keepdims=True)                  # (GPAD, 1)
        t2 = jnp.sum(tags * tags, axis=1, keepdims=True)                  # (GPAD, 1)
        pull_g = jnp.maximum(s1 - cnt * t2, 0.0) * inv_cnt
        pull = jnp.sum(pull_g * gpull * valid)

        # push: Gram matrix of the tags, restricted to off-diagonal same-call pairs.
        # (The original's "sum(exp(-diff)) - num" is exactly "drop the diagonal".)
        gram = lax.dot_general(tags, tags, (((1,), (1,)), ((), ())),
                               preferred_element_type=jnp.float32)        # (GPAD, GPAD)
        diff = jnp.maximum(t2 + jnp.transpose(t2) - 2.0 * gram, 0.0)
        overlap = lax.dot_general(gchan, gchan, (((1,), (1,)), ((), ())),
                                  preferred_element_type=jnp.float32)     # (GPAD, GPAD)
        samecall = (overlap > 0.5).astype(jnp.float32)
        gi = lax.broadcasted_iota(jnp.int32, (gpad, gpad), 0)
        gj = lax.broadcasted_iota(jnp.int32, (gpad, gpad), 1)
        offdiag = (gi != gj).astype(jnp.float32)
        pairmask = samecall * offdiag * (valid * jnp.transpose(valid))
        push = jnp.sum(jnp.exp(-diff) * pairmask * gpush)

        out_ref[...] += pull + push


@jax.jit
def _tag_offset_loss_device(pred, img_map, ti, tw, gpull, gpush, gchan):
    """Single device dispatch: one gridded pallas_call; only a 2-element sum follows."""
    img_num, nap, H, W = pred.shape
    hw = H * W
    n_steps, _, npad = ti.shape
    gpad = gchan.shape[1]
    half = n_steps // 2

    # H*W contraction tiling: only kicks in for very large feature maps; keeps the
    # (HW_TILE, NPAD) one-hot intermediate and pred blocks inside VMEM (v7x: 64 MiB).
    HW_TILE_MAX = 4096
    if hw <= HW_TILE_MAX:
        hw_tile, hw_p = hw, hw
    else:
        hw_tile = HW_TILE_MAX
        hw_p = _ceil_to(hw, hw_tile)
    kt = hw_p // hw_tile

    # channels-first, flat-spatial view: a contiguous reshape, no gather / no copy of pred
    pred_r = pred.astype(jnp.float32).reshape(img_num, nap, hw)
    if hw_p != hw:
        pred_r = jnp.pad(pred_r, ((0, 0), (0, 0), (0, hw_p - hw)))

    flops = (n_steps * kt * (2 * nap + 12) * hw_tile * npad
             + n_steps * (4 * gpad * npad * nap + 4 * gpad * gpad * nap))
    bytes_accessed = (n_steps * kt * nap * hw_tile * 4
                      + n_steps * (9 * npad + gpad * (nap + 2)) * 4
                      + 2 * 8 * 128 * 4)

    out = pl.pallas_call(
        _tag_loss_kernel,
        out_shape=jax.ShapeDtypeStruct((2, 8, 128), jnp.float32),
        grid_spec=pltpu.PrefetchScalarGridSpec(
            num_scalar_prefetch=1,
            grid=(2, half, kt),               # (megacore half, image-within-half, HW tile)
            in_specs=[
                pl.BlockSpec((1, nap, hw_tile),
                             lambda p, c, k, imap: (imap[p * half + c], 0, k)),
                pl.BlockSpec((1, 5, npad),
                             lambda p, c, k, imap: (p * half + c, 0, 0)),
                pl.BlockSpec((1, 4, npad),
                             lambda p, c, k, imap: (p * half + c, 0, 0)),
                pl.BlockSpec((1, gpad, 1),
                             lambda p, c, k, imap: (p * half + c, 0, 0)),
                pl.BlockSpec((1, gpad, 1),
                             lambda p, c, k, imap: (p * half + c, 0, 0)),
                pl.BlockSpec((1, gpad, nap),
                             lambda p, c, k, imap: (p * half + c, 0, 0)),
            ],
            out_specs=pl.BlockSpec((1, 8, 128), lambda p, c, k, imap: (p, 0, 0)),
            scratch_shapes=[pltpu.VMEM((nap, npad), jnp.float32)],
        ),
        compiler_params=pltpu.CompilerParams(
            dimension_semantics=("parallel", "arbitrary", "arbitrary")),
        cost_estimate=pl.CostEstimate(flops=int(flops),
                                      transcendentals=int(n_steps * gpad * gpad),
                                      bytes_accessed=int(bytes_accessed)),
    )(img_map, pred_r, ti, tw, gpull, gpush, gchan)

    # two per-core partial sums (v7x megacore); trivial on v5e/v6e
    return jnp.sum(out[:, 0, 0])


# ----------------------------------------------------------------------------- host-side glue

def _build_image_steps(pred_shape, gt_inds, anchor_inds, group_anchor, pull_weight,
                       push_weight, anchor_list, offset_preds, get_trans_center):
    eps = 1e-6
    img_num, num_anchors, H, W = pred_shape
    steps = []
    for img in range(img_num):
        img_gt = np.asarray(gt_inds[img])
        offset_pred = np.asarray(offset_preds[img])
        if group_anchor:
            anchor_groups = gen_group_inds(np.asarray(anchor_inds[img]))
        else:
            anchor_groups = [np.arange(len(img_gt))]
        call_w = 1.0 / (len(anchor_groups) * img_num)

        centers_list = []           # per-point centers
        gids = []                   # per-point group id (image-global)
        g_pull, g_push = [], []     # per-group coefficients
        g_chan_rows = []            # per-group channel mask (num_anchors,)

        for sel in anchor_groups:
            sel = np.asarray(sel).reshape(-1)
            sub_gt = img_gt[sel]
            groups = gen_group_inds(sub_gt)
            if len(groups) == 1:
                # original: torch.mean(pred)*0 -> contributes exactly 0 (forward only).
                # TODO(synk): this constant-0 path drops the (zero) gradient edge to pred.
                continue
            kept = [g for g in groups if sub_gt[g[0]] != -1]
            num = len(kept)
            tag_dim_call = int(sel.shape[0])
            pull_coeff = pull_weight * call_w / ((num + eps) * tag_dim_call)
            push_coeff = (0.5 * push_weight * call_w / ((num - 1) * num + eps)
                          if num >= 2 else 0.0)
            chan_row = np.zeros((num_anchors,), np.float32)
            chan_row[sel] = 1.0
            for g in kept:
                # NOTE: matches the original exactly, which indexes the *full*
                # anchor_list / offset_pred with the group-LOCAL indices `g`.
                c = np.asarray(get_trans_center(anchor_list[g], offset_pred[g]),
                               np.float32).reshape(-1, 2)
                gid = len(g_pull)
                centers_list.append(c)
                gids.extend([gid] * c.shape[0])
                g_pull.append(pull_coeff)
                g_push.append(push_coeff)
                g_chan_rows.append(chan_row)

        steps.append(dict(
            img=img,
            centers=(np.concatenate(centers_list, axis=0) if centers_list
                     else np.zeros((0, 2), np.float32)),
            gids=np.asarray(gids, np.int32),
            g_pull=np.asarray(g_pull, np.float32),
            g_push=np.asarray(g_push, np.float32),
            g_chan=(np.stack(g_chan_rows, axis=0) if g_chan_rows
                    else np.zeros((0, num_anchors), np.float32)),
        ))
    return steps


def tag_offset_loss(pred, gt_inds, anchor_inds, group_anchor, pull_weight,
                    push_weight, anchor_list, offset_preds, get_trans_center):
    assert len(gt_inds) > 0
    img_num, num_anchors, H, W = pred.shape

    steps = _build_image_steps(pred.shape, gt_inds, anchor_inds, group_anchor,
                               float(pull_weight), float(push_weight),
                               anchor_list, offset_preds, get_trans_center)

    # Stable pad caps: floored at geometry-derived values so the compiled kernel is
    # reused across batches (per-image points/groups are bounded by num_anchors in
    # practice, so these only grow in pathological inputs).
    max_pts = max([int(s["gids"].shape[0]) for s in steps] + [num_anchors, 1])
    max_grp = max([int(s["g_pull"].shape[0]) for s in steps] + [num_anchors, 1])
    npad = _ceil_to(max_pts, 128)
    gpad = _ceil_to(max_grp, 8)
    n_steps = _ceil_to(img_num, 2)            # even: leading size-2 megacore axis

    ti = np.zeros((n_steps, 5, npad), np.int32)
    ti[:, 4, :] = gpad                        # "no group" sentinel for padded points/steps
    tw = np.zeros((n_steps, 4, npad), np.float32)
    gpull = np.zeros((n_steps, gpad, 1), np.float32)
    gpush = np.zeros((n_steps, gpad, 1), np.float32)
    gchan = np.zeros((n_steps, gpad, num_anchors), np.float32)
    img_map = np.zeros((n_steps,), np.int32)  # padded steps point at image 0, all-zero meta

    for si, s in enumerate(steps):
        img_map[si] = s["img"]
        n = int(s["gids"].shape[0])
        ng = int(s["g_pull"].shape[0])
        if ng:
            gpull[si, :ng, 0] = s["g_pull"]
            gpush[si, :ng, 0] = s["g_push"]
            gchan[si, :ng, :] = s["g_chan"]
        if n == 0:
            continue
        idx4, w4 = bilinear_taps(s["centers"], H, W)      # (n, 4) each
        ti[si, 0:4, :n] = idx4.T
        tw[si, 0:4, :n] = w4.T
        ti[si, 4, :n] = s["gids"]

    return _tag_offset_loss_device(
        jnp.asarray(pred), jnp.asarray(img_map), jnp.asarray(ti), jnp.asarray(tw),
        jnp.asarray(gpull), jnp.asarray(gpush), jnp.asarray(gchan))


class TagOffsetLoss:
    def __init__(self, reduction='mean', loss_weight=1.0, group_anchor=True,
                 pull_weight=1, push_weight=1):
        self.reduction = reduction
        self.loss_weight = loss_weight
        self.group_anchor = group_anchor
        self.pull_weight = pull_weight
        self.push_weight = push_weight

    def __call__(self, pred, gt_inds, anchor_inds, anchor_list, offset_pred,
                 get_trans_center, weight=None, avg_factor=None,
                 reduction_override=None):
        assert reduction_override in (None, 'none', 'mean', 'sum')
        loss = tag_offset_loss(pred, gt_inds, anchor_inds, self.group_anchor,
                               self.pull_weight, self.push_weight,
                               anchor_list, offset_pred, get_trans_center)
        # weighted_loss decorator with weight=None and a scalar loss is a no-op
        # for 'mean'/'sum' reductions.
        return self.loss_weight * loss


# ----------------------------------------------------------------------------- reference (numpy)

def build_bilinear_weights(centers, H, W):
    """Dense reference version of the sampling matrix (host-only, for verification)."""
    idx4, w4 = bilinear_taps(centers, H, W)
    n = idx4.shape[0]
    wmat = np.zeros((n, H * W), np.float32)
    rows = np.arange(n)
    for t in range(4):
        np.add.at(wmat, (rows, idx4[:, t]), w4[:, t])
    return wmat


def _ref_single(pred_np, gt, pull_w, push_w, anchor_list, offset, get_center):
    inds = gen_group_inds(gt)
    if len(inds) == 1:
        return 0.0
    inds = [ind for ind in inds if gt[ind[0]] != -1]
    tag_dim, H, W = pred_np.shape
    pflat = pred_np.reshape(tag_dim, H * W).T
    tags, pull = [], 0.0
    for ind in inds:
        c = get_center(anchor_list[ind], offset[ind])
        wmat = build_bilinear_weights(c, H, W)
        group = wmat @ pflat
        t = group.mean(axis=0)
        tags.append(t)
        pull += ((group - t[None, :]) ** 2).mean()
    tags = np.stack(tags)
    num = tags.shape[0]
    diff = ((tags[:, None, :] - tags[None, :, :]) ** 2).sum(-1)
    push = np.exp(-diff).sum() - num
    eps = 1e-6
    pull = pull / (num + eps)
    push = push / ((num - 1) * num + eps) * 0.5
    return push * push_w + pull * pull_w


def _ref_total(pred_np, gt_inds, anchor_inds, anchor_list, offset_preds,
               get_center, pull_w, push_w):
    total = 0.0
    for i in range(len(gt_inds)):
        groups = gen_group_inds(anchor_inds[i])
        s = 0.0
        for sel in groups:
            sel = np.asarray(sel)
            s += _ref_single(pred_np[i][sel], np.asarray(gt_inds[i])[sel],
                             pull_w, push_w, anchor_list, offset_preds[i],
                             get_center)
        total += s / len(groups)
    return total / len(gt_inds)


# ----------------------------------------------------------------------------- main

if __name__ == "__main__":
    img_num, num_anchors, H, W = 2, 8, 16, 16

    key = jax.random.PRNGKey(0)
    k1, k2 = jax.random.split(key)
    pred = jax.random.normal(k1, (img_num, num_anchors, H, W), jnp.float32)
    offset_np = (np.asarray(jax.random.normal(k2, (img_num, num_anchors, 2),
                                              jnp.float32)) * 1.5).astype(np.float32)
    offset_preds = [offset_np[i] for i in range(img_num)]

    anchor_inds = [np.array([0, 0, 0, 0, 1, 1, 1, 1]),
                   np.array([0, 0, 0, 0, 1, 1, 1, 1])]
    gt_inds = [np.array([0, 0, 1, 1, 2, 2, 3, -1]),
               np.array([5, 5, 6, 6, 7, 8, 8, 8])]

    # Deterministic anchor boxes (xyxy, pixel coords).
    cxs = np.linspace(3.0, 12.0, num_anchors, dtype=np.float32)
    cys = np.linspace(4.0, 11.0, num_anchors, dtype=np.float32)
    anchor_list = np.stack([cxs - 2.0, cys - 2.0, cxs + 2.0, cys + 2.0], axis=-1)

    def get_trans_center(anchors, offsets):
        # anchor center + predicted offset, normalized to grid_sample [-1, 1]
        # coords (align_corners=False convention).
        cx = (anchors[:, 0] + anchors[:, 2]) * 0.5 + offsets[:, 0]
        cy = (anchors[:, 1] + anchors[:, 3]) * 0.5 + offsets[:, 1]
        gx = (2.0 * cx + 1.0) / W - 1.0
        gy = (2.0 * cy + 1.0) / H - 1.0
        return np.stack([gx, gy], axis=-1).astype(np.float32)

    loss_mod = TagOffsetLoss(reduction='mean', loss_weight=1.0,
                             group_anchor=True, pull_weight=1.0, push_weight=1.0)
    loss = loss_mod(pred, gt_inds, anchor_inds, anchor_list, offset_preds,
                    get_trans_center)
    loss = jax.block_until_ready(loss)

    ref = _ref_total(np.asarray(pred), gt_inds, anchor_inds, anchor_list,
                     offset_preds, get_trans_center, 1.0, 1.0)
    assert np.isfinite(float(loss))
    assert np.allclose(float(loss), ref, rtol=5e-4, atol=5e-4), (float(loss), ref)
    print("KERNEL_OK")
</pallas_src>

<mosaic_0001>
module attributes {stable_mosaic.version = 11 : i64} {
  func.func @_tag_loss_kernel(%arg0: i32, %arg1: i32, %arg2: i32, %arg3: memref<2xi32, #tpu.memory_space<smem>>, %arg4: memref<1x8x256xf32, #tpu.memory_space<vmem>>, %arg5: memref<1x5x128xi32, #tpu.memory_space<vmem>>, %arg6: memref<1x4x128xf32, #tpu.memory_space<vmem>>, %arg7: memref<1x8x1xf32, #tpu.memory_space<vmem>>, %arg8: memref<1x8x1xf32, #tpu.memory_space<vmem>>, %arg9: memref<1x8x8xf32, #tpu.memory_space<vmem>>, %arg10: memref<1x8x128xf32, #tpu.memory_space<vmem>>, %arg11: memref<8x128xf32, #tpu.memory_space<vmem>>) attributes {dimension_semantics = [#tpu.dimension_semantics<parallel>, #tpu.dimension_semantics<arbitrary>, #tpu.dimension_semantics<arbitrary>], iteration_bounds = array<i64: 2, 1, 1>, scalar_prefetch = 1 : i64, scratch_operands = 1 : i64, tpu.core_type = #tpu.core_type<tc>, window_params = [{transform_indices = @transform_0, window_bounds = array<i64: 1, 8, 256>}, {transform_indices = @transform_1, window_bounds = array<i64: 1, 5, 128>}, {transform_indices = @transform_2, window_bounds = array<i64: 1, 4, 128>}, {transform_indices = @transform_3, window_bounds = array<i64: 1, 8, 1>}, {transform_indices = @transform_4, window_bounds = array<i64: 1, 8, 1>}, {transform_indices = @transform_5, window_bounds = array<i64: 1, 8, 8>}, {transform_indices = @transform_6, window_bounds = array<i64: 1, 8, 128>}]} {
    %c0_i32 = arith.constant 0 : i32
    %0 = arith.cmpi eq, %arg1, %c0_i32 : i32
    %c0_i32_0 = arith.constant 0 : i32
    %1 = arith.cmpi eq, %arg2, %c0_i32_0 : i32
    %2 = arith.andi %0, %1 : i1
    %3 = arith.extui %2 : i1 to i32
    %c0_i32_1 = arith.constant 0 : i32
    %4 = arith.cmpi ne, %3, %c0_i32_1 : i32
    scf.if %4 {
      %cst_22 = arith.constant 0.000000e+00 : f32
      %66 = vector.broadcast %cst_22 : f32 to vector<1x8x128xf32>
      %c0_23 = arith.constant 0 : index
      %c0_24 = arith.constant 0 : index
      %c0_25 = arith.constant 0 : index
      %67 = vector.load %arg10[%c0_23, %c0_24, %c0_25] : memref<1x8x128xf32, #tpu.memory_space<vmem>>, vector<1x8x128xf32>
      tpu.vector_store %arg10[%c0_23, %c0_24, %c0_25], %66 {strides = array<i32>} : memref<1x8x128xf32, #tpu.memory_space<vmem>>, vector<1x8x128xf32>,
    } else {
    }
    %c0 = arith.constant 0 : index
    %c0_2 = arith.constant 0 : index
    %c0_3 = arith.constant 0 : index
    %5 = vector.load %arg4[%c0, %c0_2, %c0_3] : memref<1x8x256xf32, #tpu.memory_space<vmem>>, vector<1x8x256xf32>
    %6 = vector.shape_cast %5 : vector<1x8x256xf32> to vector<8x256xf32>
    %c0_4 = arith.constant 0 : index
    %c0_5 = arith.constant 0 : index
    %c0_6 = arith.constant 0 : index
    %7 = vector.load %arg5[%c0_4, %c0_5, %c0_6] : memref<1x5x128xi32, #tpu.memory_space<vmem>>, vector<1x5x128xi32>
    %8 = vector.shape_cast %7 : vector<1x5x128xi32> to vector<5x128xi32>
    %c0_7 = arith.constant 0 : index
    %c0_8 = arith.constant 0 : index
    %c0_9 = arith.constant 0 : index
    %9 = vector.load %arg6[%c0_7, %c0_8, %c0_9] : memref<1x4x128xf32, #tpu.memory_space<vmem>>, vector<1x4x128xf32>
    %10 = vector.shape_cast %9 : vector<1x4x128xf32> to vector<4x128xf32>
    %c256_i32 = arith.constant 256 : i32
    %11 = arith.muli %arg2, %c256_i32 : i32
    %12 = tpu.iota {dimensions = array<i32: 0>} : vector<256x128xi32>
    %13 = vector.extract_strided_slice %8 {offsets = [0, 0], sizes = [1, 128], strides = [1, 1]} : vector<5x128xi32> to vector<1x128xi32>
    %14 = vector.broadcast %11 : i32 to vector<1x128xi32>
    %15 = arith.subi %13, %14 : vector<1x128xi32>
    %16 = vector.broadcast %15 : vector<1x128xi32> to vector<256x128xi32>
    %17 = arith.cmpi eq, %12, %16 : vector<256x128xi32>
    %18 = vector.extract_strided_slice %10 {offsets = [0, 0], sizes = [1, 128], strides = [1, 1]} : vector<4x128xf32> to vector<1x128xf32>
    %cst = arith.constant 0.000000e+00 : f32
    %19 = vector.shape_cast %18 : vector<1x128xf32> to vector<1x128xf32>
    %20 = vector.broadcast %19 : vector<1x128xf32> to vector<256x128xf32>
    %21 = vector.broadcast %cst : f32 to vector<256x128xf32>
    %22 = arith.select %17, %20, %21 : vector<256x128xi1>, vector<256x128xf32>
    %23 = vector.extract_strided_slice %8 {offsets = [1, 0], sizes = [1, 128], strides = [1, 1]} : vector<5x128xi32> to vector<1x128xi32>
    %24 = vector.broadcast %11 : i32 to vector<1x128xi32>
    %25 = arith.subi %23, %24 : vector<1x128xi32>
    %26 = vector.broadcast %25 : vector<1x128xi32> to vector<256x128xi32>
    %27 = arith.cmpi eq, %12, %26 : vector<256x128xi32>
    %28 = vector.extract_strided_slice %10 {offsets = [1, 0], sizes = [1, 128], strides = [1, 1]} : vector<4x128xf32> to vector<1x128xf32>
    %cst_10 = arith.constant 0.000000e+00 : f32
    %29 = vector.shape_cast %28 : vector<1x128xf32> to vector<1x128xf32>
    %30 = vector.broadcast %29 : vector<1x128xf32> to vector<256x128xf32>
    %31 = vector.broadcast %cst_10 : f32 to vector<256x128xf32>
    %32 = arith.select %27, %30, %31 : vector<256x128xi1>, vector<256x128xf32>
    %33 = arith.addf %22, %32 : vector<256x128xf32>
    %34 = vector.extract_strided_slice %8 {offsets = [2, 0], sizes = [1, 128], strides = [1, 1]} : vector<5x128xi32> to vector<1x128xi32>
    %35 = vector.broadcast %11 : i32 to vector<1x128xi32>
    %36 = arith.subi %34, %35 : vector<1x128xi32>
    %37 = vector.broadcast %36 : vector<1x128xi32> to vector<256x128xi32>
    %38 = arith.cmpi eq, %12, %37 : vector<256x128xi32>
    %39 = vector.extract_strided_slice %10 {offsets = [2, 0], sizes = [1, 128], strides = [1, 1]} : vector<4x128xf32> to vector<1x128xf32>
    %cst_11 = arith.constant 0.000000e+00 : f32
    %40 = vector.shape_cast %39 : vector<1x128xf32> to vector<1x128xf32>
    %41 = vector.broadcast %40 : vector<1x128xf32> to vector<256x128xf32>
    %42 = vector.broadcast %cst_11 : f32 to vector<256x128xf32>
    %43 = arith.select %38, %41, %42 : vector<256x128xi1>, vector<256x128xf32>
    %44 = arith.addf %33, %43 : vector<256x128xf32>
    %45 = vector.extract_strided_slice %8 {offsets = [3, 0], sizes = [1, 128], strides = [1, 1]} : vector<5x128xi32> to vector<1x128xi32>
    %46 = vector.broadcast %11 : i32 to vector<1x128xi32>
    %47 = arith.subi %45, %46 : vector<1x128xi32>
    %48 = vector.broadcast %47 : vector<1x128xi32> to vector<256x128xi32>
    %49 = arith.cmpi eq, %12, %48 : vector<256x128xi32>
    %50 = vector.extract_strided_slice %10 {offsets = [3, 0], sizes = [1, 128], strides = [1, 1]} : vector<4x128xf32> to vector<1x128xf32>
    %cst_12 = arith.constant 0.000000e+00 : f32
    %51 = vector.shape_cast %50 : vector<1x128xf32> to vector<1x128xf32>
    %52 = vector.broadcast %51 : vector<1x128xf32> to vector<256x128xf32>
    %53 = vector.broadcast %cst_12 : f32 to vector<256x128xf32>
    %54 = arith.select %49, %52, %53 : vector<256x128xi1>, vector<256x128xf32>
    %55 = arith.addf %44, %54 : vector<256x128xf32>
    %c0_i32_13 = arith.constant 0 : i32
    %56 = arith.cmpi eq, %arg2, %c0_i32_13 : i32
    %57 = arith.extui %56 : i1 to i32
    %c0_i32_14 = arith.constant 0 : i32
    %58 = arith.cmpi ne, %57, %c0_i32_14 : i32
    scf.if %58 {
      %cst_22 = arith.constant 0.000000e+00 : f32
      %66 = vector.broadcast %cst_22 : f32 to vector<8x128xf32>
      %c0_23 = arith.constant 0 : index
      %c0_24 = arith.constant 0 : index
      %67 = vector.load %arg11[%c0_23, %c0_24] : memref<8x128xf32, #tpu.memory_space<vmem>>, vector<8x128xf32>
      tpu.vector_store %arg11[%c0_23, %c0_24], %66 {strides = array<i32>} : memref<8x128xf32, #tpu.memory_space<vmem>>, vector<8x128xf32>,
    } else {
    }
    %c0_15 = arith.constant 0 : index
    %c0_16 = arith.constant 0 : index
    %59 = vector.load %arg11[%c0_15, %c0_16] : memref<8x128xf32, #tpu.memory_space<vmem>>, vector<8x128xf32>
    %cst_17 = arith.constant dense<0.000000e+00> : vector<8x128xf32>
    %60 = tpu.matmul %6, %55, %cst_17 {dimension_numbers = #tpu.dot_dimension_numbers<[1], [0], [0], [1], [0, 0, 1, 1], [], []>} : vector<8x256xf32>, vector<256x128xf32>, vector<8x128xf32> -> vector<8x128xf32>
    %61 = arith.addf %59, %60 : vector<8x128xf32>
    %c0_18 = arith.constant 0 : index
    %c0_19 = arith.constant 0 : index
    %62 = vector.load %arg11[%c0_18, %c0_19] : memref<8x128xf32, #tpu.memory_space<vmem>>, vector<8x128xf32>
    tpu.vector_store %arg11[%c0_18, %c0_19], %61 {strides = array<i32>} : memref<8x128xf32, #tpu.memory_space<vmem>>, vector<8x128xf32>,
    %c0_i32_20 = arith.constant 0 : i32
    %63 = arith.cmpi eq, %arg2, %c0_i32_20 : i32
    %64 = arith.extui %63 : i1 to i32
    %c0_i32_21 = arith.constant 0 : i32
    %65 = arith.cmpi ne, %64, %c0_i32_21 : i32
    scf.if %65 {
      %c0_22 = arith.constant 0 : index
      %c0_23 = arith.constant 0 : index
      %66 = vector.load %arg11[%c0_22, %c0_23] : memref<8x128xf32, #tpu.memory_space<vmem>>, vector<8x128xf32>
      %67 = vector.extract_strided_slice %8 {offsets = [4, 0], sizes = [1, 128], strides = [1, 1]} : vector<5x128xi32> to vector<1x128xi32>
      %68 = tpu.iota {dimensions = array<i32: 0>} : vector<8x128xi32>
      %69 = vector.broadcast %67 : vector<1x128xi32> to vector<8x128xi32>
      %70 = arith.cmpi eq, %68, %69 : vector<8x128xi32>
      %71 = arith.extui %70 : vector<8x128xi1> to vector<8x128xi32>
      %72 = arith.sitofp %71 : vector<8x128xi32> to vector<8x128xf32>
      %cst_24 = arith.constant dense<0.000000e+00> : vector<8xf32>
      %73 = vector.multi_reduction <add>, %72, %cst_24 [1] : vector<8x128xf32> to vector<8xf32>
      %74 = vector.shape_cast %73 : vector<8xf32> to vector<8x1xf32>
      %cst_25 = arith.constant 5.000000e-01 : f32
      %75 = vector.broadcast %cst_25 : f32 to vector<8x1xf32>
      %76 = arith.cmpf ogt, %74, %75 : vector<8x1xf32>
      %77 = arith.extui %76 : vector<8x1xi1> to vector<8x1xi32>
      %78 = arith.sitofp %77 : vector<8x1xi32> to vector<8x1xf32>
      %cst_26 = arith.constant 1.000000e+00 : f32
      %79 = vector.broadcast %cst_26 : f32 to vector<8x1xf32>
      %80 = arith.maximumf %74, %79 : vector<8x1xf32>
      %cst_27 = arith.constant 1.000000e+00 : f32
      %81 = vector.broadcast %cst_27 : f32 to vector<8x1xf32>
      %82 = arith.divf %81, %80 : vector<8x1xf32>
      %c0_28 = arith.constant 0 : index
      %c0_29 = arith.constant 0 : index
      %c0_30 = arith.constant 0 : index
      %83 = vector.load %arg9[%c0_28, %c0_29, %c0_30] : memref<1x8x8xf32, #tpu.memory_space<vmem>>, vector<1x8x8xf32>
      %84 = vector.shape_cast %83 : vector<1x8x8xf32> to vector<8x8xf32>
      %c0_31 = arith.constant 0 : index
      %c0_32 = arith.constant 0 : index
      %c0_33 = arith.constant 0 : index
      %85 = vector.load %arg7[%c0_31, %c0_32, %c0_33] : memref<1x8x1xf32, #tpu.memory_space<vmem>>, vector<1x8x1xf32>
      %86 = vector.shape_cast %85 : vector<1x8x1xf32> to vector<8x1xf32>
      %c0_34 = arith.constant 0 : index
      %c0_35 = arith.constant 0 : index
      %c0_36 = arith.constant 0 : index
      %87 = vector.load %arg8[%c0_34, %c0_35, %c0_36] : memref<1x8x1xf32, #tpu.memory_space<vmem>>, vector<1x8x1xf32>
      %88 = vector.shape_cast %87 : vector<1x8x1xf32> to vector<8x1xf32>
      %cst_37 = arith.constant dense<0.000000e+00> : vector<8x8xf32>
      %89 = tpu.matmul %72, %66, %cst_37 {dimension_numbers = #tpu.dot_dimension_numbers<[1], [1], [0], [0], [0, 0, 1, 0], [], []>} : vector<8x128xf32>, vector<8x128xf32>, vector<8x8xf32> -> vector<8x8xf32>
      %90 = arith.mulf %89, %84 : vector<8x8xf32>
      %91 = vector.broadcast %82 : vector<8x1xf32> to vector<8x8xf32>
      %92 = arith.mulf %90, %91 : vector<8x8xf32>
      %93 = arith.mulf %66, %66 : vector<8x128xf32>
      %cst_38 = arith.constant dense<0.000000e+00> : vector<8x8xf32>
      %94 = tpu.matmul %72, %93, %cst_38 {dimension_numbers = #tpu.dot_dimension_numbers<[1], [1], [0], [0], [0, 0, 1, 0], [], []>} : vector<8x128xf32>, vector<8x128xf32>, vector<8x8xf32> -> vector<8x8xf32>
      %95 = arith.mulf %94, %84 : vector<8x8xf32>
      %cst_39 = arith.constant dense<0.000000e+00> : vector<8xf32>
      %96 = vector.multi_reduction <add>, %95, %cst_39 [1] : vector<8x8xf32> to vector<8xf32>
      %97 = vector.shape_cast %96 : vector<8xf32> to vector<8x1xf32>
      %98 = arith.mulf %92, %92 : vector<8x8xf32>
      %cst_40 = arith.constant dense<0.000000e+00> : vector<8xf32>
      %99 = vector.multi_reduction <add>, %98, %cst_40 [1] : vector<8x8xf32> to vector<8xf32>
      %100 = vector.shape_cast %99 : vector<8xf32> to vector<8x1xf32>
      %101 = arith.mulf %74, %100 : vector<8x1xf32>
      %102 = arith.subf %97, %101 : vector<8x1xf32>
      %cst_41 = arith.constant 0.000000e+00 : f32
      %103 = vector.broadcast %cst_41 : f32 to vector<8x1xf32>
      %104 = arith.maximumf %102, %103 : vector<8x1xf32>
      %105 = arith.mulf %104, %82 : vector<8x1xf32>
      %106 = arith.mulf %105, %86 : vector<8x1xf32>
      %107 = arith.mulf %106, %78 : vector<8x1xf32>
      %108 = vector.shape_cast %107 : vector<8x1xf32> to vector<1x8x1xf32>
      %cst_42 = arith.constant dense<0.000000e+00> : vector<1xf32>
      %109 = vector.multi_reduction <add>, %108, %cst_42 [1, 2] : vector<1x8x1xf32> to vector<1xf32>
      %110 = vector.shape_cast %109 : vector<1xf32> to vector<1x1x1xf32>
      %111 = vector.extract %110[0, 0, 0] : f32 from vector<1x1x1xf32>
      %cst_43 = arith.constant dense<0.000000e+00> : vector<8x8xf32>
      %112 = tpu.matmul %92, %92, %cst_43 {dimension_numbers = #tpu.dot_dimension_numbers<[1], [1], [0], [0], [0, 0, 1, 0], [], []>} : vector<8x8xf32>, vector<8x8xf32>, vector<8x8xf32> -> vector<8x8xf32>
      %113 = tpu.transpose %100, [1, 0] : vector<8x1xf32> -> vector<1x8xf32>
      %114 = vector.broadcast %100 : vector<8x1xf32> to vector<8x8xf32>
      %115 = vector.broadcast %113 : vector<1x8xf32> to vector<8x8xf32>
      %116 = arith.addf %114, %115 : vector<8x8xf32>
      %cst_44 = arith.constant 2.000000e+00 : f32
      %117 = vector.broadcast %cst_44 : f32 to vector<8x8xf32>
      %118 = arith.mulf %117, %112 : vector<8x8xf32>
      %119 = arith.subf %116, %118 : vector<8x8xf32>
      %cst_45 = arith.constant 0.000000e+00 : f32
      %120 = vector.broadcast %cst_45 : f32 to vector<8x8xf32>
      %121 = arith.maximumf %119, %120 : vector<8x8xf32>
      %cst_46 = arith.constant dense<0.000000e+00> : vector<8x8xf32>
      %122 = tpu.matmul %84, %84, %cst_46 {dimension_numbers = #tpu.dot_dimension_numbers<[1], [1], [0], [0], [0, 0, 1, 0], [], []>} : vector<8x8xf32>, vector<8x8xf32>, vector<8x8xf32> -> vector<8x8xf32>
      %cst_47 = arith.constant 5.000000e-01 : f32
      %123 = vector.broadcast %cst_47 : f32 to vector<8x8xf32>
      %124 = arith.cmpf ogt, %122, %123 : vector<8x8xf32>
      %125 = arith.extui %124 : vector<8x8xi1> to vector<8x8xi32>
      %126 = arith.sitofp %125 : vector<8x8xi32> to vector<8x8xf32>
      %127 = tpu.iota {dimensions = array<i32: 0>} : vector<8x8xi32>
      %128 = tpu.iota {dimensions = array<i32: 1>} : vector<8x8xi32>
      %129 = arith.cmpi ne, %127, %128 : vector<8x8xi32>
      %130 = arith.extui %129 : vector<8x8xi1> to vector<8x8xi32>
      %131 = arith.sitofp %130 : vector<8x8xi32> to vector<8x8xf32>
      %132 = arith.mulf %126, %131 : vector<8x8xf32>
      %133 = tpu.transpose %78, [1, 0] : vector<8x1xf32> -> vector<1x8xf32>
      %134 = vector.broadcast %78 : vector<8x1xf32> to vector<8x8xf32>
      %135 = vector.broadcast %133 : vector<1x8xf32> to vector<8x8xf32>
      %136 = arith.mulf %134, %135 : vector<8x8xf32>
      %137 = arith.mulf %132, %136 : vector<8x8xf32>
      %cst_48 = arith.constant 0.000000e+00 : f32
      %138 = vector.broadcast %cst_48 : f32 to vector<8x8xf32>
      %139 = arith.subf %138, %121 : vector<8x8xf32>
      %140 = math.exp %139 : vector<8x8xf32>
      %141 = arith.mulf %140, %137 : vector<8x8xf32>
      %142 = vector.broadcast %88 : vector<8x1xf32> to vector<8x8xf32>
      %143 = arith.mulf %141, %142 : vector<8x8xf32>
      %144 = vector.shape_cast %143 : vector<8x8xf32> to vector<1x8x8xf32>
      %cst_49 = arith.constant dense<0.000000e+00> : vector<1xf32>
      %145 = vector.multi_reduction <add>, %144, %cst_49 [1, 2] : vector<1x8x8xf32> to vector<1xf32>
      %146 = vector.shape_cast %145 : vector<1xf32> to vector<1x1x1xf32>
      %147 = vector.extract %146[0, 0, 0] : f32 from vector<1x1x1xf32>
      %c0_50 = arith.constant 0 : index
      %c0_51 = arith.constant 0 : index
      %c0_52 = arith.constant 0 : index
      %148 = vector.load %arg10[%c0_50, %c0_51, %c0_52] : memref<1x8x128xf32, #tpu.memory_space<vmem>>, vector<1x8x128xf32>
      %149 = arith.addf %111, %147 : f32
      %150 = vector.broadcast %149 : f32 to vector<1x8x128xf32>
      %151 = arith.addf %148, %150 : vector<1x8x128xf32>
      %c0_53 = arith.constant 0 : index
      %c0_54 = arith.constant 0 : index
      %c0_55 = arith.constant 0 : index
      %152 = vector.load %arg10[%c0_53, %c0_54, %c0_55] : memref<1x8x128xf32, #tpu.memory_space<vmem>>, vector<1x8x128xf32>
      tpu.vector_store %arg10[%c0_53, %c0_54, %c0_55], %151 {strides = array<i32>} : memref<1x8x128xf32, #tpu.memory_space<vmem>>, vector<1x8x128xf32>,
    } else {
    }
    return
  }
  func.func @transform_0(%arg0: i32, %arg1: i32, %arg2: i32, %arg3: memref<2xi32, #tpu.memory_space<smem>>) -> (i32, i32, i32) {
    %c1_i32 = arith.constant 1 : i32
    %0 = arith.muli %arg0, %c1_i32 : i32
    %1 = arith.addi %0, %arg1 : i32
    %2 = arith.index_cast %1 : i32 to index
    %3 = memref.load %arg3[%2] : memref<2xi32, #tpu.memory_space<smem>>
    %c0_i32 = arith.constant 0 : i32
    %c0_i32_0 = arith.constant 0 : i32
    return %3, %c0_i32, %arg2 : i32, i32, i32
  }
  func.func @transform_1(%arg0: i32, %arg1: i32, %arg2: i32, %arg3: memref<2xi32, #tpu.memory_space<smem>>) -> (i32, i32, i32) {
    %c1_i32 = arith.constant 1 : i32
    %0 = arith.muli %arg0, %c1_i32 : i32
    %1 = arith.addi %0, %arg1 : i32
    %c0_i32 = arith.constant 0 : i32
    %c0_i32_0 = arith.constant 0 : i32
    %c0_i32_1 = arith.constant 0 : i32
    return %1, %c0_i32, %c0_i32_0 : i32, i32, i32
  }
  func.func @transform_2(%arg0: i32, %arg1: i32, %arg2: i32, %arg3: memref<2xi32, #tpu.memory_space<smem>>) -> (i32, i32, i32) {
    %c1_i32 = arith.constant 1 : i32
    %0 = arith.muli %arg0, %c1_i32 : i32
    %1 = arith.addi %0, %arg1 : i32
    %c0_i32 = arith.constant 0 : i32
    %c0_i32_0 = arith.constant 0 : i32
    %c0_i32_1 = arith.constant 0 : i32
    return %1, %c0_i32, %c0_i32_0 : i32, i32, i32
  }
  func.func @transform_3(%arg0: i32, %arg1: i32, %arg2: i32, %arg3: memref<2xi32, #tpu.memory_space<smem>>) -> (i32, i32, i32) {
    %c1_i32 = arith.constant 1 : i32
    %0 = arith.muli %arg0, %c1_i32 : i32
    %1 = arith.addi %0, %arg1 : i32
    %c0_i32 = arith.constant 0 : i32
    %c0_i32_0 = arith.constant 0 : i32
    %c0_i32_1 = arith.constant 0 : i32
    return %1, %c0_i32, %c0_i32_0 : i32, i32, i32
  }
  func.func @transform_4(%arg0: i32, %arg1: i32, %arg2: i32, %arg3: memref<2xi32, #tpu.memory_space<smem>>) -> (i32, i32, i32) {
    %c1_i32 = arith.constant 1 : i32
    %0 = arith.muli %arg0, %c1_i32 : i32
    %1 = arith.addi %0, %arg1 : i32
    %c0_i32 = arith.constant 0 : i32
    %c0_i32_0 = arith.constant 0 : i32
    %c0_i32_1 = arith.constant 0 : i32
    return %1, %c0_i32, %c0_i32_0 : i32, i32, i32
  }
  func.func @transform_5(%arg0: i32, %arg1: i32, %arg2: i32, %arg3: memref<2xi32, #tpu.memory_space<smem>>) -> (i32, i32, i32) {
    %c1_i32 = arith.constant 1 : i32
    %0 = arith.muli %arg0, %c1_i32 : i32
    %1 = arith.addi %0, %arg1 : i32
    %c0_i32 = arith.constant 0 : i32
    %c0_i32_0 = arith.constant 0 : i32
    %c0_i32_1 = arith.constant 0 : i32
    return %1, %c0_i32, %c0_i32_0 : i32, i32, i32
  }
  func.func @transform_6(%arg0: i32, %arg1: i32, %arg2: i32, %arg3: memref<2xi32, #tpu.memory_space<smem>>) -> (i32, i32, i32) {
    %c0_i32 = arith.constant 0 : i32
    %c0_i32_0 = arith.constant 0 : i32
    %c0_i32_1 = arith.constant 0 : i32
    return %arg0, %c0_i32, %c0_i32_0 : i32, i32, i32
  }
}

</mosaic_0001>

<llo_original>
// kernel: _tag_offset_loss_device.1
$region0: #{_tag_offset_loss_device.1}
  #allocation0 [shape = 'u32[]', space=smem, size = 0x4, offset = 0x4, fixed_abs, tag = 'smem constant byte address 0x4 - core index']
  #allocation1 [shape = 'u32[144,128]{1,0:T(1,128)}', space=vmem, size = 0x12000, scoped, tag = 'internal scratch']
  #allocation2 [shape = 'f32[8,128]{1,0:T(8,128)}', space=vmem, size = 0x1000, scoped, tag = 'scratch operand']
  #allocation3 [shape = 's32[1]{0}', space=sflag, size = 0x4, scoped, tag = 'scoped memory for _tag_offset_loss_device.1']
  #allocation4 [shape = 'u8[512]{0}', space=smem, size = 0x200, scoped, tag = 'prefetched SMEM operand 0']
  %s0 = inlined_call_operand.vmem [shape: s32[2], index: 0, kind: input, shape index: {}]
  %s1 = inlined_call_operand.vmem [shape: f32[2,8,256], index: 1, kind: input, shape index: {}]
  %s2 = inlined_call_operand.vmem [shape: s32[2,5,128], index: 2, kind: input, shape index: {}]
  %s3 = inlined_call_operand.vmem [shape: f32[2,4,128], index: 3, kind: input, shape index: {}]
  %s4 = inlined_call_operand.vmem [shape: f32[2,8,1], index: 4, kind: input, shape index: {}]
  %s5 = inlined_call_operand.vmem [shape: f32[2,8,1], index: 5, kind: input, shape index: {}]
  %s6 = inlined_call_operand.vmem [shape: f32[2,8,8], index: 6, kind: input, shape index: {}]
  %s7 = inlined_call_operand.vmem [shape: f32[2,8,128], index: 7, kind: output, shape index: {}]
  %s8 = sld [smem:[#allocation0]]
  $region69: #{_tag_offset_loss_device.1} parent=0
    _
  %s10 = ssub.s32 1, %s8
  %s11 = scalar_select 0, %s10, %s8
  %s12 = sshll.u32 %s0, 4
  %s13 = int_to_ptr.vmem [resolvable:$true] %s12
  %15 = dma.vmem_to_smem %s13, 16, [#allocation4], [#allocation3]
  %16 = dma.done [#allocation3], 16
  %17 = sfence
  loop: start=0, step=1, limit=4
  $region2: #{_tag_offset_loss_device.1} parent=0 // loop_pre_header
    _
  $region3: #{_tag_offset_loss_device.1} parent=0 // loop_header
    %s19 = sphi 0, %s23
    %p20 = scmp.ge.s32.totalorder %s19, 4
    %s26 = sphi 0, %s45
    %s27 = sphi 0, %s41
    %s28 = sphi 0, %s37
    %s29 = sphi 0, %s26
    %s30 = sphi 0, %s27
    %s31 = sphi 0, %s28
    %s32 = sphi 0, %s29
    %s33 = sphi 0, %s30
    %s34 = sphi 0, %s31
    %s54 = sphi 0, %s56
    %s57 = sphi 0, %s54
    %s58 = sphi 0, %s57
    %s74 = sphi 0, %s58
    %s82 = sphi 0, %s84
    %s85 = sphi 0, %s82
    %s86 = sphi 0, %s85
    %s102 = sphi 0, %s86
    %s110 = sphi 0, %s112
    %s113 = sphi 0, %s110
    %s114 = sphi 0, %s113
    %s130 = sphi 0, %s114
    %s138 = sphi 0, %s140
    %s141 = sphi 0, %s138
    %s142 = sphi 0, %s141
    %s158 = sphi 0, %s142
    %s166 = sphi 0, %s168
    %s169 = sphi 0, %s166
    %s170 = sphi 0, %s169
    %s186 = sphi 0, %s170
    %s194 = sphi 0, %s196
    %s197 = sphi 0, %s194
    %s198 = sphi 0, %s197
    %s214 = sphi 0, %s198
    %s220 = sphi 0, %s222
    %s223 = sphi 0, %s220
    %s224 = sphi 0, %s223
    %s240 = sphi 0, %s224
  $region4: #{_tag_offset_loss_device.1} parent=0 // loop_header_branch
    %22 = sbr.rel (%p20) target = $region8
  $region5: #{_tag_offset_loss_device.1} parent=0 // loop_body
    %s24 = ssub.s32 %s19, 1
    %s25 = ssub.s32 %s19, 2
    %s35 = sadd.s32 1, %s28
    %p36 = scmp.ge.s32.totalorder %s35, 1
    %s37 = scalar_select %p36, 0, %s35
    %s38 = sadd.s32 1, %s27
    %s39 = scalar_select %p36, %s38, %s27
    %p40 = scmp.ge.s32.totalorder %s39, 1
    %s41 = scalar_select %p40, 0, %s39
    %s42 = sadd.s32 1, %s26
    %s43 = scalar_select %p40, %s42, %s26
    %p44 = scmp.ge.s32.totalorder %s43, 2
    %s45 = scalar_select %p44, 0, %s43
    %s46 = sadd.s32 %s26, %s27
    %s47 = sld [smem:[#allocation4 + %s46]]
    %s48 = sadd.s32 %s45, %s41
    %s49 = sld [smem:[#allocation4 + %s48]]
    %s50 = ssub.s32 %s47, %s49
    %s51 = ssub.s32 %s28, %s37
    %s52 = sor.u32 %s50, %s51
    %p53 = scmp.eq.s32.totalorder %s52, 0
    %s55 = sadd.s32 %s54, 1
    %s56 = scalar_select %p53, %s54, %s55
    %p59 = pneg %p53
    %p60 = scmp.eq.s32.totalorder %s19, 1
    %p61 = por %p59, %p60
    %p62 = scmp.ne.s32.totalorder %s54, %s57
    %p63 = scmp.eq.s32.totalorder %s19, 0
    %p64 = por %p62, %p63
    %p65 = scmp.ne.s32.totalorder %s54, %s57
    %p66 = scmp.eq.s32.totalorder %s24, 1
    %p67 = por %p65, %p66
    %p68 = scmp.ne.s32.totalorder %s57, %s58
    %p69 = scmp.eq.s32.totalorder %s24, 0
    %p70 = por %p68, %p69
    %p71 = scmp.ne.s32.totalorder %s57, %s58
    %p72 = scmp.eq.s32.totalorder %s25, 1
    %p73 = por %p71, %p72
    %p75 = scmp.ne.s32.totalorder %s58, %s74
    %p76 = scmp.eq.s32.totalorder %s25, 0
    %p77 = por %p75, %p76
    %s78 = sadd.s32 %s26, %s27
    %s79 = sadd.s32 %s45, %s41
    %s80 = ssub.s32 %s78, %s79
    %p81 = scmp.eq.s32.totalorder %s80, 0
    %s83 = sadd.s32 %s82, 1
    %s84 = scalar_select %p81, %s82, %s83
    %p87 = pneg %p81
    %p88 = scmp.eq.s32.totalorder %s19, 1
    %p89 = por %p87, %p88
    %p90 = scmp.ne.s32.totalorder %s82, %s85
    %p91 = scmp.eq.s32.totalorder %s19, 0
    %p92 = por %p90, %p91
    %p93 = scmp.ne.s32.totalorder %s82, %s85
    %p94 = scmp.eq.s32.totalorder %s24, 1
    %p95 = por %p93, %p94
    %p96 = scmp.ne.s32.totalorder %s85, %s86
    %p97 = scmp.eq.s32.totalorder %s24, 0
    %p98 = por %p96, %p97
    %p99 = scmp.ne.s32.totalorder %s85, %s86
    %p100 = scmp.eq.s32.totalorder %s25, 1
    %p101 = por %p99, %p100
    %p103 = scmp.ne.s32.totalorder %s86, %s102
    %p104 = scmp.eq.s32.totalorder %s25, 0
    %p105 = por %p103, %p104
    %s106 = sadd.s32 %s26, %s27
    %s107 = sadd.s32 %s45, %s41
    %s108 = ssub.s32 %s106, %s107
    %p109 = scmp.eq.s32.totalorder %s108, 0
    %s111 = sadd.s32 %s110, 1
    %s112 = scalar_select %p109, %s110, %s111
    %p115 = pneg %p109
    %p116 = scmp.eq.s32.totalorder %s19, 1
    %p117 = por %p115, %p116
    %p118 = scmp.ne.s32.totalorder %s110, %s113
    %p119 = scmp.eq.s32.totalorder %s19, 0
    %p120 = por %p118, %p119
    %p121 = scmp.ne.s32.totalorder %s110, %s113
    %p122 = scmp.eq.s32.totalorder %s24, 1
    %p123 = por %p121, %p122
    %p124 = scmp.ne.s32.totalorder %s113, %s114
    %p125 = scmp.eq.s32.totalorder %s24, 0
    %p126 = por %p124, %p125
    %p127 = scmp.ne.s32.totalorder %s113, %s114
    %p128 = scmp.eq.s32.totalorder %s25, 1
    %p129 = por %p127, %p128
    %p131 = scmp.ne.s32.totalorder %s114, %s130
    %p132 = scmp.eq.s32.totalorder %s25, 0
    %p133 = por %p131, %p132
    %s134 = sadd.s32 %s26, %s27
    %s135 = sadd.s32 %s45, %s41
    %s136 = ssub.s32 %s134, %s135
    %p137 = scmp.eq.s32.totalorder %s136, 0
    %s139 = sadd.s32 %s138, 1
    %s140 = scalar_select %p137, %s138, %s139
    %p143 = pneg %p137
    %p144 = scmp.eq.s32.totalorder %s19, 1
    %p145 = por %p143, %p144
    %p146 = scmp.ne.s32.totalorder %s138, %s141
    %p147 = scmp.eq.s32.totalorder %s19, 0
    %p148 = por %p146, %p147
    %p149 = scmp.ne.s32.totalorder %s138, %s141
    %p150 = scmp.eq.s32.totalorder %s24, 1
    %p151 = por %p149, %p150
    %p152 = scmp.ne.s32.totalorder %s141, %s142
    %p153 = scmp.eq.s32.totalorder %s24, 0
    %p154 = por %p152, %p153
    %p155 = scmp.ne.s32.totalorder %s141, %s142
    %p156 = scmp.eq.s32.totalorder %s25, 1
    %p157 = por %p155, %p156
    %p159 = scmp.ne.s32.totalorder %s142, %s158
    %p160 = scmp.eq.s32.totalorder %s25, 0
    %p161 = por %p159, %p160
    %s162 = sadd.s32 %s26, %s27
    %s163 = sadd.s32 %s45, %s41
    %s164 = ssub.s32 %s162, %s163
    %p165 = scmp.eq.s32.totalorder %s164, 0
    %s167 = sadd.s32 %s166, 1
    %s168 = scalar_select %p165, %s166, %s167
    %p171 = pneg %p165
    %p172 = scmp.eq.s32.totalorder %s19, 1
    %p173 = por %p171, %p172
    %p174 = scmp.ne.s32.totalorder %s166, %s169
    %p175 = scmp.eq.s32.totalorder %s19, 0
    %p176 = por %p174, %p175
    %p177 = scmp.ne.s32.totalorder %s166, %s169
    %p178 = scmp.eq.s32.totalorder %s24, 1
    %p179 = por %p177, %p178
    %p180 = scmp.ne.s32.totalorder %s169, %s170
    %p181 = scmp.eq.s32.totalorder %s24, 0
    %p182 = por %p180, %p181
    %p183 = scmp.ne.s32.totalorder %s169, %s170
    %p184 = scmp.eq.s32.totalorder %s25, 1
    %p185 = por %p183, %p184
    %p187 = scmp.ne.s32.totalorder %s170, %s186
    %p188 = scmp.eq.s32.totalorder %s25, 0
    %p189 = por %p187, %p188
    %s190 = sadd.s32 %s26, %s27
    %s191 = sadd.s32 %s45, %s41
    %s192 = ssub.s32 %s190, %s191
    %p193 = scmp.eq.s32.totalorder %s192, 0
    %s195 = sadd.s32 %s194, 1
    %s196 = scalar_select %p193, %s194, %s195
    %p199 = pneg %p193
    %p200 = scmp.eq.s32.totalorder %s19, 1
    %p201 = por %p199, %p200
    %p202 = scmp.ne.s32.totalorder %s194, %s197
    %p203 = scmp.eq.s32.totalorder %s19, 0
    %p204 = por %p202, %p203
    %p205 = scmp.ne.s32.totalorder %s194, %s197
    %p206 = scmp.eq.s32.totalorder %s24, 1
    %p207 = por %p205, %p206
    %p208 = scmp.ne.s32.totalorder %s197, %s198
    %p209 = scmp.eq.s32.totalorder %s24, 0
    %p210 = por %p208, %p209
    %p211 = scmp.ne.s32.totalorder %s197, %s198
    %p212 = scmp.eq.s32.totalorder %s25, 1
    %p213 = por %p211, %p212
    %p215 = scmp.ne.s32.totalorder %s198, %s214
    %p216 = scmp.eq.s32.totalorder %s25, 0
    %p217 = por %p215, %p216
    %s218 = ssub.s32 %s26, %s45
    %p219 = scmp.eq.s32.totalorder %s218, 0
    %s221 = sadd.s32 %s220, 1
    %s222 = scalar_select %p219, %s220, %s221
    %p225 = pneg %p219
    %p226 = scmp.eq.s32.totalorder %s19, 1
    %p227 = por %p225, %p226
    %p228 = scmp.ne.s32.totalorder %s220, %s223
    %p229 = scmp.eq.s32.totalorder %s19, 0
    %p230 = por %p228, %p229
    %p231 = scmp.ne.s32.totalorder %s220, %s223
    %p232 = scmp.eq.s32.totalorder %s24, 1
    %p233 = por %p231, %p232
    %p234 = scmp.ne.s32.totalorder %s223, %s224
    %p235 = scmp.eq.s32.totalorder %s24, 0
    %p236 = por %p234, %p235
    %p237 = scmp.ne.s32.totalorder %s223, %s224
    %p238 = scmp.eq.s32.totalorder %s25, 1
    %p239 = por %p237, %p238
    %p241 = scmp.ne.s32.totalorder %s224, %s240
    %p242 = scmp.eq.s32.totalorder %s25, 0
    %p243 = por %p241, %p242
    %p244 = scmp.le.s32.totalorder 1, %s19
    %p245 = scmp.lt.s32.totalorder %s19, 3
    %p246 = pnand %p244, %p245
    %p247 = pneg %p246
    // Predicated region
    $region9: #{_tag_offset_loss_device.1} parent=5 // pred_check
      _
    $region10: #{_tag_offset_loss_device.1} parent=5 // pred_check_branch
      %249 = sbr.rel (%p246) target = $region12
    $region11: #{_tag_offset_loss_device.1} parent=5 // pred_region
      %s250 = ssub.s32 %s19, 1
    $region12: #{_tag_offset_loss_device.1} parent=5 // pred_fallthru
      _
    %p251 = scmp.lt.s32.totalorder %s19, 2
    // Predicated region
    $region13: #{_tag_offset_loss_device.1} parent=5 // pred_check
      %p252 = pneg %p251
    $region14: #{_tag_offset_loss_device.1} parent=5 // pred_check_branch
      %254 = sbr.rel (%p252) target = $region16
    $region15: #{_tag_offset_loss_device.1} parent=5 // pred_region
      // Predicated region
      $region17: #{_tag_offset_loss_device.1} parent=15 // pred_check
        %p255 = pneg %p64
      $region18: #{_tag_offset_loss_device.1} parent=15 // pred_check_branch
        %257 = sbr.rel (%p255) target = $region20
      $region19: #{_tag_offset_loss_device.1} parent=15 // pred_region
        %s258 = sadd.s32 %s26, %s27
        %s259 = sld [smem:[#allocation4 + %s258]]
        %s260 = smul.u32 2, %s28
        %p261 = scmp.lt.s32.totalorder %s259, 1
        %s262 = scalar_select %p261, %s259, 1
        %p263 = scmp.lt.s32.totalorder %s260, 1
        %s264 = scalar_select %p263, %s260, 1
        %s265 = smul.addr %s262, 2
        %s266 = sadd.s32 %s264, %s265
        %s267 = smul.addr %s266, 8
        %s268 = scalar_lea.vmem %s1, %s267
        %s269 = sadd.s32 %s26, %s27
        %s270 = sld [smem:[#allocation4 + %s269]]
        %s271 = smul.u32 2, %s28
      $region20: #{_tag_offset_loss_device.1} parent=15 // pred_fallthru
        _
      // Predicated region
      $region21: #{_tag_offset_loss_device.1} parent=15 // pred_check
        %p272 = pneg %p92
      $region22: #{_tag_offset_loss_device.1} parent=15 // pred_check_branch
        %274 = sbr.rel (%p272) target = $region24
      $region23: #{_tag_offset_loss_device.1} parent=15 // pred_region
        %s275 = sadd.s32 %s26, %s27
        %p276 = scmp.lt.s32.totalorder %s275, 1
        %s277 = scalar_select %p276, %s275, 1
        %s278 = smul.addr %s277, 8
        %s279 = scalar_lea.vmem %s2, %s278
        %s280 = sadd.s32 %s26, %s27
      $region24: #{_tag_offset_loss_device.1} parent=15 // pred_fallthru
        _
      // Predicated region
      $region25: #{_tag_offset_loss_device.1} parent=15 // pred_check
        %p281 = pneg %p120
      $region26: #{_tag_offset_loss_device.1} parent=15 // pred_check_branch
        %283 = sbr.rel (%p281) target = $region28
      $region27: #{_tag_offset_loss_device.1} parent=15 // pred_region
        %s284 = sadd.s32 %s26, %s27
        %p285 = scmp.lt.s32.totalorder %s284, 1
        %s286 = scalar_select %p285, %s284, 1
        %s287 = smul.addr %s286, 4
        %s288 = scalar_lea.vmem %s3, %s287
        %s289 = sadd.s32 %s26, %s27
      $region28: #{_tag_offset_loss_device.1} parent=15 // pred_fallthru
        _
      // Predicated region
      $region29: #{_tag_offset_loss_device.1} parent=15 // pred_check
        %p290 = pneg %p148
      $region30: #{_tag_offset_loss_device.1} parent=15 // pred_check_branch
        %292 = sbr.rel (%p290) target = $region32
      $region31: #{_tag_offset_loss_device.1} parent=15 // pred_region
        %s293 = sadd.s32 %s26, %s27
        %p294 = scmp.lt.s32.totalorder %s293, 1
        %s295 = scalar_select %p294, %s293, 1
        %s296 = smul.addr %s295, 8
        %s297 = scalar_lea.vmem %s4, %s296
        %s298 = sadd.s32 %s26, %s27
      $region32: #{_tag_offset_loss_device.1} parent=15 // pred_fallthru
        _
      // Predicated region
      $region33: #{_tag_offset_loss_device.1} parent=15 // pred_check
        %p299 = pneg %p176
      $region34: #{_tag_offset_loss_device.1} parent=15 // pred_check_branch
        %301 = sbr.rel (%p299) target = $region36
      $region35: #{_tag_offset_loss_device.1} parent=15 // pred_region
        %s302 = sadd.s32 %s26, %s27
        %p303 = scmp.lt.s32.totalorder %s302, 1
        %s304 = scalar_select %p303, %s302, 1
        %s305 = smul.addr %s304, 8
        %s306 = scalar_lea.vmem %s5, %s305
        %s307 = sadd.s32 %s26, %s27
      $region36: #{_tag_offset_loss_device.1} parent=15 // pred_fallthru
        _
      // Predicated region
      $region37: #{_tag_offset_loss_device.1} parent=15 // pred_check
        %p308 = pneg %p204
      $region38: #{_tag_offset_loss_device.1} parent=15 // pred_check_branch
        %310 = sbr.rel (%p308) target = $region40
      $region39: #{_tag_offset_loss_device.1} parent=15 // pred_region
        %s311 = sadd.s32 %s26, %s27
        %p312 = scmp.lt.s32.totalorder %s311, 1
        %s313 = scalar_select %p312, %s311, 1
        %s314 = smul.addr %s313, 8
        %s315 = scalar_lea.vmem %s6, %s314
        %s316 = sadd.s32 %s26, %s27
      $region40: #{_tag_offset_loss_device.1} parent=15 // pred_fallthru
        _
    $region16: #{_tag_offset_loss_device.1} parent=5 // pred_fallthru
      _
    %p317 = scmp.le.s32.totalorder 1, %s19
    %p318 = scmp.lt.s32.totalorder %s19, 3
    %p319 = pnand %p317, %p318
    %p320 = pneg %p319
    // Predicated region
    $region41: #{_tag_offset_loss_device.1} parent=5 // pred_check
      _
    $region42: #{_tag_offset_loss_device.1} parent=5 // pred_check_branch
      %322 = sbr.rel (%p319) target = $region44
    $region43: #{_tag_offset_loss_device.1} parent=5 // pred_region
      %s323 = ssub.s32 %s19, 1
      %s324 = sadd.s32 %s29, %s30
      %s325 = sld [smem:[#allocation4 + %s324]]
      %s326 = smul.u32 2, %s31
      %p327 = scmp.lt.s32.totalorder %s325, 1
      %s328 = scalar_select %p327, %s325, 1
      %p329 = scmp.lt.s32.totalorder %s326, 1
      %s330 = scalar_select %p329, %s326, 1
      %s331 = smul.addr %s328, 2
      %s332 = sadd.s32 %s330, %s331
      %s333 = smul.addr %s332, 8
      %s334 = scalar_lea.vmem %s1, %s333
      %p335 = pneg %p70
      %p336 = pneg %p67
      %s337 = sadd.s32 %s29, %s30
      %p338 = scmp.lt.s32.totalorder %s337, 1
      %s339 = scalar_select %p338, %s337, 1
      %s340 = smul.addr %s339, 8
      %s341 = scalar_lea.vmem %s2, %s340
      %p342 = pneg %p98
      %p343 = pneg %p95
      %s344 = sadd.s32 %s29, %s30
      %p345 = scmp.lt.s32.totalorder %s344, 1
      %s346 = scalar_select %p345, %s344, 1
      %s347 = smul.addr %s346, 4
      %s348 = scalar_lea.vmem %s3, %s347
      %p349 = pneg %p126
      %p350 = pneg %p123
      %s351 = sadd.s32 %s29, %s30
      %p352 = scmp.lt.s32.totalorder %s351, 1
      %s353 = scalar_select %p352, %s351, 1
      %s354 = smul.addr %s353, 8
      %s355 = scalar_lea.vmem %s4, %s354
      %p356 = pneg %p154
      %p357 = pneg %p151
      %s358 = sadd.s32 %s29, %s30
      %p359 = scmp.lt.s32.totalorder %s358, 1
      %s360 = scalar_select %p359, %s358, 1
      %s361 = smul.addr %s360, 8
      %s362 = scalar_lea.vmem %s5, %s361
      %p363 = pneg %p182
      %p364 = pneg %p179
      %s365 = sadd.s32 %s29, %s30
      %p366 = scmp.lt.s32.totalorder %s365, 1
      %s367 = scalar_select %p366, %s365, 1
      %s368 = smul.addr %s367, 8
      %s369 = scalar_lea.vmem %s6, %s368
      %p370 = pneg %p210
      %p371 = pneg %p207
      %p372 = pneg %p236
      %p373 = pneg %p233
      %p374 = scmp.lt.s32.totalorder %s29, 1
      %s375 = scalar_select %p374, %s29, 1
      %s376 = smul.addr %s375, 8
      %s377 = scalar_lea.vmem %s7, %s376
      %s378 = sadd.s32 %s29, %s30
      %s379 = sld [smem:[#allocation4 + %s378]]
      %s380 = smul.u32 2, %s31
      %p381 = scmp.lt.s32.totalorder %s379, 1
      %s382 = scalar_select %p381, %s379, 1
      %p383 = scmp.lt.s32.totalorder %s380, 1
      %s384 = scalar_select %p383, %s380, 1
      %s385 = smul.addr %s382, 2
      %s386 = sadd.s32 %s384, %s385
      %s387 = smul.addr %s386, 8
      %s388 = scalar_lea.vmem %s1, %s387
      %s389 = sadd.s32 %s29, %s30
      %s390 = sld [smem:[#allocation4 + %s389]]
      %s391 = smul.u32 2, %s31
      %s392 = sadd.s32 %s29, %s30
      %p393 = scmp.lt.s32.totalorder %s392, 1
      %s394 = scalar_select %p393, %s392, 1
      %s395 = smul.addr %s394, 8
      %s396 = scalar_lea.vmem %s2, %s395
      %s397 = sadd.s32 %s29, %s30
      %s398 = sadd.s32 %s29, %s30
      %p399 = scmp.lt.s32.totalorder %s398, 1
      %s400 = scalar_select %p399, %s398, 1
      %s401 = smul.addr %s400, 4
      %s402 = scalar_lea.vmem %s3, %s401
      %s403 = sadd.s32 %s29, %s30
      %s404 = sadd.s32 %s29, %s30
      %p405 = scmp.lt.s32.totalorder %s404, 1
      %s406 = scalar_select %p405, %s404, 1
      %s407 = smul.addr %s406, 8
      %s408 = scalar_lea.vmem %s4, %s407
      %s409 = sadd.s32 %s29, %s30
      %s410 = sadd.s32 %s29, %s30
      %p411 = scmp.lt.s32.totalorder %s410, 1
      %s412 = scalar_select %p411, %s410, 1
      %s413 = smul.addr %s412, 8
      %s414 = scalar_lea.vmem %s5, %s413
      %s415 = sadd.s32 %s29, %s30
      %s416 = sadd.s32 %s29, %s30
      %p417 = scmp.lt.s32.totalorder %s416, 1
      %s418 = scalar_select %p417, %s416, 1
      %s419 = smul.addr %s418, 8
      %s420 = scalar_lea.vmem %s6, %s419
      %s421 = sadd.s32 %s29, %s30
      %p422 = scmp.lt.s32.totalorder %s29, 1
      %s423 = scalar_select %p422, %s29, 1
      %s424 = smul.addr %s423, 8
      %s425 = scalar_lea.vmem %s7, %s424
      %p426 = scmp.eq.s32.totalorder %s30, 0
      %p427 = scmp.eq.s32.totalorder %s31, 0
      %p428 = pnand %p426, %p427
      %p429 = pneg %p428
      // Predicated region
      $region45: #{_tag_offset_loss_device.1} parent=43 // pred_check
        _
      $region46: #{_tag_offset_loss_device.1} parent=43 // pred_check_branch
        %431 = sbr.rel (%p428) target = $region48
      $region47: #{_tag_offset_loss_device.1} parent=43 // pred_region
        %432 = vst [vmem:[%s425] sm:$0xff] 0.0
      $region48: #{_tag_offset_loss_device.1} parent=43 // pred_fallthru
        _
      %v433 = vld [vmem:[%s388] sm:$0xff]
      %v434 = vld [vmem:[%s388 + $0x8] sm:$0xff]
      %v435 = vld [vmem:[%s396] sm:$0x1f]
      %v436 = vld [vmem:[%s402] sm:$0xf]
      %s437 = smul.u32 %s31, 256
      %v438 = vlaneseq
      %v439 = vshrl.u32 %v438, 7
      %v440 = vadd.s32 %v439, 8
      %v441 = vadd.s32 %v439, 16
      %v442 = vadd.s32 %v439, 24
      %v443 = vadd.s32 %v439, 32
      %v444 = vadd.s32 %v439, 40
      %v445 = vadd.s32 %v439, 48
      %v446 = vadd.s32 %v439, 56
      %v447 = vadd.s32 %v439, 64
      %v448 = vadd.s32 %v439, 72
      %v449 = vadd.s32 %v439, 80
      %v450 = vadd.s32 %v439, 88
      %v451 = vadd.s32 %v439, 96
      %v452 = vadd.s32 %v439, 104
      %v453 = vadd.s32 %v439, 112
      %v454 = vadd.s32 %v439, 120
      %v455 = vadd.s32 %v439, 128
      %v456 = vadd.s32 %v439, 136
      %v457 = vadd.s32 %v439, 144
      %v458 = vadd.s32 %v439, 152
      %v459 = vadd.s32 %v439, 160
      %v460 = vadd.s32 %v439, 168
      %v461 = vadd.s32 %v439, 176
      %v462 = vadd.s32 %v439, 184
      %v463 = vadd.s32 %v439, 192
      %v464 = vadd.s32 %v439, 200
      %v465 = vadd.s32 %v439, 208
      %v466 = vadd.s32 %v439, 216
      %v467 = vadd.s32 %v439, 224
      %v468 = vadd.s32 %v439, 232
      %v469 = vadd.s32 %v439, 240
      %v470 = vadd.s32 %v439, 248
      %v471 = vstv %s437
      %v472 = vsub.s32 %v435, %v471
      %v473 = vlaneseq
      %v474 = vshrl.u32 %v473, 7
      %v475 = vsub.s32 0, %v474
      %v476 = vrot.slane %v472, %v475
      %vm477 = vcmp.eq.s32.totalorder %v439, %v476
      %vm478 = vcmp.eq.s32.totalorder %v440, %v476
      %vm479 = vcmp.eq.s32.totalorder %v441, %v476
      %vm480 = vcmp.eq.s32.totalorder %v442, %v476
      %vm481 = vcmp.eq.s32.totalorder %v443, %v476
      %vm482 = vcmp.eq.s32.totalorder %v444, %v476
      %vm483 = vcmp.eq.s32.totalorder %v445, %v476
      %vm484 = vcmp.eq.s32.totalorder %v446, %v476
      %vm485 = vcmp.eq.s32.totalorder %v447, %v476
      %vm486 = vcmp.eq.s32.totalorder %v448, %v476
      %vm487 = vcmp.eq.s32.totalorder %v449, %v476
      %vm488 = vcmp.eq.s32.totalorder %v450, %v476
      %vm489 = vcmp.eq.s32.totalorder %v451, %v476
      %vm490 = vcmp.eq.s32.totalorder %v452, %v476
      %vm491 = vcmp.eq.s32.totalorder %v453, %v476
      %vm492 = vcmp.eq.s32.totalorder %v454, %v476
      %vm493 = vcmp.eq.s32.totalorder %v455, %v476
      %vm494 = vcmp.eq.s32.totalorder %v456, %v476
      %vm495 = vcmp.eq.s32.totalorder %v457, %v476
      %vm496 = vcmp.eq.s32.totalorder %v458, %v476
      %vm497 = vcmp.eq.s32.totalorder %v459, %v476
      %vm498 = vcmp.eq.s32.totalorder %v460, %v476
      %vm499 = vcmp.eq.s32.totalorder %v461, %v476
      %vm500 = vcmp.eq.s32.totalorder %v462, %v476
      %vm501 = vcmp.eq.s32.totalorder %v463, %v476
      %vm502 = vcmp.eq.s32.totalorder %v464, %v476
      %vm503 = vcmp.eq.s32.totalorder %v465, %v476
      %vm504 = vcmp.eq.s32.totalorder %v466, %v476
      %vm505 = vcmp.eq.s32.totalorder %v467, %v476
      %vm506 = vcmp.eq.s32.totalorder %v468, %v476
      %vm507 = vcmp.eq.s32.totalorder %v469, %v476
      %vm508 = vcmp.eq.s32.totalorder %v470, %v476
      %v509 = vlaneseq
      %v510 = vshrl.u32 %v509, 7
      %v511 = vsub.s32 0, %v510
      %v512 = vrot.slane %v436, %v511
      %v513 = vsel %vm477, %v512, 0.0
      %v514 = vsel %vm478, %v512, 0.0
      %v515 = vsel %vm479, %v512, 0.0
      %v516 = vsel %vm480, %v512, 0.0
      %v517 = vsel %vm481, %v512, 0.0
      %v518 = vsel %vm482, %v512, 0.0
      %v519 = vsel %vm483, %v512, 0.0
      %v520 = vsel %vm484, %v512, 0.0
      %v521 = vsel %vm485, %v512, 0.0
      %v522 = vsel %vm486, %v512, 0.0
      %v523 = vsel %vm487, %v512, 0.0
      %v524 = vsel %vm488, %v512, 0.0
      %v525 = vsel %vm489, %v512, 0.0
      %v526 = vsel %vm490, %v512, 0.0
      %v527 = vsel %vm491, %v512, 0.0
      %v528 = vsel %vm492, %v512, 0.0
      %v529 = vsel %vm493, %v512, 0.0
      %v530 = vsel %vm494, %v512, 0.0
      %v531 = vsel %vm495, %v512, 0.0
      %v532 = vsel %vm496, %v512, 0.0
      %v533 = vsel %vm497, %v512, 0.0
      %v534 = vsel %vm498, %v512, 0.0
      %v535 = vsel %vm499, %v512, 0.0
      %v536 = vsel %vm500, %v512, 0.0
      %v537 = vsel %vm501, %v512, 0.0
      %v538 = vsel %vm502, %v512, 0.0
      %v539 = vsel %vm503, %v512, 0.0
      %v540 = vsel %vm504, %v512, 0.0
      %v541 = vsel %vm505, %v512, 0.0
      %v542 = vsel %vm506, %v512, 0.0
      %v543 = vsel %vm507, %v512, 0.0
      %v544 = vsel %vm508, %v512, 0.0
      %v545 = vlaneseq
      %v546 = vshrl.u32 %v545, 7
      %v547 = vsub.s32 1, %v546
      %v548 = vrot.slane %v472, %v547
      %vm549 = vcmp.eq.s32.totalorder %v439, %v548
      %vm550 = vcmp.eq.s32.totalorder %v440, %v548
      %vm551 = vcmp.eq.s32.totalorder %v441, %v548
      %vm552 = vcmp.eq.s32.totalorder %v442, %v548
      %vm553 = vcmp.eq.s32.totalorder %v443, %v548
      %vm554 = vcmp.eq.s32.totalorder %v444, %v548
      %vm555 = vcmp.eq.s32.totalorder %v445, %v548
      %vm556 = vcmp.eq.s32.totalorder %v446, %v548
      %vm557 = vcmp.eq.s32.totalorder %v447, %v548
      %vm558 = vcmp.eq.s32.totalorder %v448, %v548
      %vm559 = vcmp.eq.s32.totalorder %v449, %v548
      %vm560 = vcmp.eq.s32.totalorder %v450, %v548
      %vm561 = vcmp.eq.s32.totalorder %v451, %v548
      %vm562 = vcmp.eq.s32.totalorder %v452, %v548
      %vm563 = vcmp.eq.s32.totalorder %v453, %v548
      %vm564 = vcmp.eq.s32.totalorder %v454, %v548
      %vm565 = vcmp.eq.s32.totalorder %v455, %v548
      %vm566 = vcmp.eq.s32.totalorder %v456, %v548
      %vm567 = vcmp.eq.s32.totalorder %v457, %v548
      %vm568 = vcmp.eq.s32.totalorder %v458, %v548
      %vm569 = vcmp.eq.s32.totalorder %v459, %v548
      %vm570 = vcmp.eq.s32.totalorder %v460, %v548
      %vm571 = vcmp.eq.s32.totalorder %v461, %v548
      %vm572 = vcmp.eq.s32.totalorder %v462, %v548
      %vm573 = vcmp.eq.s32.totalorder %v463, %v548
      %vm574 = vcmp.eq.s32.totalorder %v464, %v548
      %vm575 = vcmp.eq.s32.totalorder %v465, %v548
      %vm576 = vcmp.eq.s32.totalorder %v466, %v548
      %vm577 = vcmp.eq.s32.totalorder %v467, %v548
      %vm578 = vcmp.eq.s32.totalorder %v468, %v548
      %vm579 = vcmp.eq.s32.totalorder %v469, %v548
      %vm580 = vcmp.eq.s32.totalorder %v470, %v548
      %v581 = vlaneseq
      %v582 = vshrl.u32 %v581, 7
      %v583 = vsub.s32 1, %v582
      %v584 = vrot.slane %v436, %v583
      %v585 = vsel %vm549, %v584, 0.0
      %v586 = vsel %vm550, %v584, 0.0
      %v587 = vsel %vm551, %v584, 0.0
      %v588 = vsel %vm552, %v584, 0.0
      %v589 = vsel %vm553, %v584, 0.0
      %v590 = vsel %vm554, %v584, 0.0
      %v591 = vsel %vm555, %v584, 0.0
      %v592 = vsel %vm556, %v584, 0.0
      %v593 = vsel %vm557, %v584, 0.0
      %v594 = vsel %vm558, %v584, 0.0
      %v595 = vsel %vm559, %v584, 0.0
      %v596 = vsel %vm560, %v584, 0.0
      %v597 = vsel %vm561, %v584, 0.0
      %v598 = vsel %vm562, %v584, 0.0
      %v599 = vsel %vm563, %v584, 0.0
      %v600 = vsel %vm564, %v584, 0.0
      %v601 = vsel %vm565, %v584, 0.0
      %v602 = vsel %vm566, %v584, 0.0
      %v603 = vsel %vm567, %v584, 0.0
      %v604 = vsel %vm568, %v584, 0.0
      %v605 = vsel %vm569, %v584, 0.0
      %v606 = vsel %vm570, %v584, 0.0
      %v607 = vsel %vm571, %v584, 0.0
      %v608 = vsel %vm572, %v584, 0.0
      %v609 = vsel %vm573, %v584, 0.0
      %v610 = vsel %vm574, %v584, 0.0
      %v611 = vsel %vm575, %v584, 0.0
      %v612 = vsel %vm576, %v584, 0.0
      %v613 = vsel %vm577, %v584, 0.0
      %v614 = vsel %vm578, %v584, 0.0
      %v615 = vsel %vm579, %v584, 0.0
      %v616 = vsel %vm580, %v584, 0.0
      %v617 = vadd.f32 %v513, %v585
      %v618 = vadd.f32 %v514, %v586
      %v619 = vadd.f32 %v515, %v587
      %v620 = vadd.f32 %v516, %v588
      %v621 = vadd.f32 %v517, %v589
      %v622 = vadd.f32 %v518, %v590
      %v623 = vadd.f32 %v519, %v591
      %v624 = vadd.f32 %v520, %v592
      %v625 = vadd.f32 %v521, %v593
      %v626 = vadd.f32 %v522, %v594
      %v627 = vadd.f32 %v523, %v595
      %v628 = vadd.f32 %v524, %v596
      %v629 = vadd.f32 %v525, %v597
      %v630 = vadd.f32 %v526, %v598
      %v631 = vadd.f32 %v527, %v599
      %v632 = vadd.f32 %v528, %v600
      %v633 = vadd.f32 %v529, %v601
      %v634 = vadd.f32 %v530, %v602
      %v635 = vadd.f32 %v531, %v603
      %v636 = vadd.f32 %v532, %v604
      %v637 = vadd.f32 %v533, %v605
      %v638 = vadd.f32 %v534, %v606
      %v639 = vadd.f32 %v535, %v607
      %v640 = vadd.f32 %v536, %v608
      %v641 = vadd.f32 %v537, %v609
      %v642 = vadd.f32 %v538, %v610
      %v643 = vadd.f32 %v539, %v611
      %v644 = vadd.f32 %v540, %v612
      %v645 = vadd.f32 %v541, %v613
      %v646 = vadd.f32 %v542, %v614
      %v647 = vadd.f32 %v543, %v615
      %v648 = vadd.f32 %v544, %v616
      %v649 = vlaneseq
      %v650 = vshrl.u32 %v649, 7
      %v651 = vsub.s32 2, %v650
      %v652 = vrot.slane %v472, %v651
      %vm653 = vcmp.eq.s32.totalorder %v439, %v652
      %vm654 = vcmp.eq.s32.totalorder %v440, %v652
      %vm655 = vcmp.eq.s32.totalorder %v441, %v652
      %vm656 = vcmp.eq.s32.totalorder %v442, %v652
      %vm657 = vcmp.eq.s32.totalorder %v443, %v652
      %vm658 = vcmp.eq.s32.totalorder %v444, %v652
      %vm659 = vcmp.eq.s32.totalorder %v445, %v652
      %vm660 = vcmp.eq.s32.totalorder %v446, %v652
      %vm661 = vcmp.eq.s32.totalorder %v447, %v652
      %vm662 = vcmp.eq.s32.totalorder %v448, %v652
      %vm663 = vcmp.eq.s32.totalorder %v449, %v652
      %vm664 = vcmp.eq.s32.totalorder %v450, %v652
      %vm665 = vcmp.eq.s32.totalorder %v451, %v652
      %vm666 = vcmp.eq.s32.totalorder %v452, %v652
      %vm667 = vcmp.eq.s32.totalorder %v453, %v652
      %vm668 = vcmp.eq.s32.totalorder %v454, %v652
      %vm669 = vcmp.eq.s32.totalorder %v455, %v652
      %vm670 = vcmp.eq.s32.totalorder %v456, %v652
      %vm671 = vcmp.eq.s32.totalorder %v457, %v652
      %vm672 = vcmp.eq.s32.totalorder %v458, %v652
      %vm673 = vcmp.eq.s32.totalorder %v459, %v652
      %vm674 = vcmp.eq.s32.totalorder %v460, %v652
      %vm675 = vcmp.eq.s32.totalorder %v461, %v652
      %vm676 = vcmp.eq.s32.totalorder %v462, %v652
      %vm677 = vcmp.eq.s32.totalorder %v463, %v652
      %vm678 = vcmp.eq.s32.totalorder %v464, %v652
      %vm679 = vcmp.eq.s32.totalorder %v465, %v652
      %vm680 = vcmp.eq.s32.totalorder %v466, %v652
      %vm681 = vcmp.eq.s32.totalorder %v467, %v652
      %vm682 = vcmp.eq.s32.totalorder %v468, %v652
      %vm683 = vcmp.eq.s32.totalorder %v469, %v652
      %vm684 = vcmp.eq.s32.totalorder %v470, %v652
      %v685 = vlaneseq
      %v686 = vshrl.u32 %v685, 7
      %v687 = vsub.s32 2, %v686
      %v688 = vrot.slane %v436, %v687
      %v689 = vsel %vm653, %v688, 0.0
      %v690 = vsel %vm654, %v688, 0.0
      %v691 = vsel %vm655, %v688, 0.0
      %v692 = vsel %vm656, %v688, 0.0
      %v693 = vsel %vm657, %v688, 0.0
      %v694 = vsel %vm658, %v688, 0.0
      %v695 = vsel %vm659, %v688, 0.0
      %v696 = vsel %vm660, %v688, 0.0
      %v697 = vsel %vm661, %v688, 0.0
      %v698 = vsel %vm662, %v688, 0.0
      %v699 = vsel %vm663, %v688, 0.0
      %v700 = vsel %vm664, %v688, 0.0
      %v701 = vsel %vm665, %v688, 0.0
      %v702 = vsel %vm666, %v688, 0.0
      %v703 = vsel %vm667, %v688, 0.0
      %v704 = vsel %vm668, %v688, 0.0
      %v705 = vsel %vm669, %v688, 0.0
      %v706 = vsel %vm670, %v688, 0.0
      %v707 = vsel %vm671, %v688, 0.0
      %v708 = vsel %vm672, %v688, 0.0
      %v709 = vsel %vm673, %v688, 0.0
      %v710 = vsel %vm674, %v688, 0.0
      %v711 = vsel %vm675, %v688, 0.0
      %v712 = vsel %vm676, %v688, 0.0
      %v713 = vsel %vm677, %v688, 0.0
      %v714 = vsel %vm678, %v688, 0.0
      %v715 = vsel %vm679, %v688, 0.0
      %v716 = vsel %vm680, %v688, 0.0
      %v717 = vsel %vm681, %v688, 0.0
      %v718 = vsel %vm682, %v688, 0.0
      %v719 = vsel %vm683, %v688, 0.0
      %v720 = vsel %vm684, %v688, 0.0
      %v721 = vadd.f32 %v617, %v689
      %v722 = vadd.f32 %v618, %v690
      %v723 = vadd.f32 %v619, %v691
      %v724 = vadd.f32 %v620, %v692
      %v725 = vadd.f32 %v621, %v693
      %v726 = vadd.f32 %v622, %v694
      %v727 = vadd.f32 %v623, %v695
      %v728 = vadd.f32 %v624, %v696
      %v729 = vadd.f32 %v625, %v697
      %v730 = vadd.f32 %v626, %v698
      %v731 = vadd.f32 %v627, %v699
      %v732 = vadd.f32 %v628, %v700
      %v733 = vadd.f32 %v629, %v701
      %v734 = vadd.f32 %v630, %v702
      %v735 = vadd.f32 %v631, %v703
      %v736 = vadd.f32 %v632, %v704
      %v737 = vadd.f32 %v633, %v705
      %v738 = vadd.f32 %v634, %v706
      %v739 = vadd.f32 %v635, %v707
      %v740 = vadd.f32 %v636, %v708
      %v741 = vadd.f32 %v637, %v709
      %v742 = vadd.f32 %v638, %v710
      %v743 = vadd.f32 %v639, %v711
      %v744 = vadd.f32 %v640, %v712
      %v745 = vadd.f32 %v641, %v713
      %v746 = vadd.f32 %v642, %v714
      %v747 = vadd.f32 %v643, %v715
      %v748 = vadd.f32 %v644, %v716
      %v749 = vadd.f32 %v645, %v717
      %v750 = vadd.f32 %v646, %v718
      %v751 = vadd.f32 %v647, %v719
      %v752 = vadd.f32 %v648, %v720
      %v753 = vlaneseq
      %v754 = vshrl.u32 %v753, 7
      %v755 = vsub.s32 3, %v754
      %v756 = vrot.slane %v472, %v755
      %vm757 = vcmp.eq.s32.totalorder %v439, %v756
      %vm758 = vcmp.eq.s32.totalorder %v440, %v756
      %vm759 = vcmp.eq.s32.totalorder %v441, %v756
      %vm760 = vcmp.eq.s32.totalorder %v442, %v756
      %vm761 = vcmp.eq.s32.totalorder %v443, %v756
      %vm762 = vcmp.eq.s32.totalorder %v444, %v756
      %vm763 = vcmp.eq.s32.totalorder %v445, %v756
      %vm764 = vcmp.eq.s32.totalorder %v446, %v756
      %vm765 = vcmp.eq.s32.totalorder %v447, %v756
      %vm766 = vcmp.eq.s32.totalorder %v448, %v756
      %vm767 = vcmp.eq.s32.totalorder %v449, %v756
      %vm768 = vcmp.eq.s32.totalorder %v450, %v756
      %vm769 = vcmp.eq.s32.totalorder %v451, %v756
      %vm770 = vcmp.eq.s32.totalorder %v452, %v756
      %vm771 = vcmp.eq.s32.totalorder %v453, %v756
      %vm772 = vcmp.eq.s32.totalorder %v454, %v756
      %vm773 = vcmp.eq.s32.totalorder %v455, %v756
      %vm774 = vcmp.eq.s32.totalorder %v456, %v756
      %vm775 = vcmp.eq.s32.totalorder %v457, %v756
      %vm776 = vcmp.eq.s32.totalorder %v458, %v756
      %vm777 = vcmp.eq.s32.totalorder %v459, %v756
      %vm778 = vcmp.eq.s32.totalorder %v460, %v756
      %vm779 = vcmp.eq.s32.totalorder %v461, %v756
      %vm780 = vcmp.eq.s32.totalorder %v462, %v756
      %vm781 = vcmp.eq.s32.totalorder %v463, %v756
      %vm782 = vcmp.eq.s32.totalorder %v464, %v756
      %vm783 = vcmp.eq.s32.totalorder %v465, %v756
      %vm784 = vcmp.eq.s32.totalorder %v466, %v756
      %vm785 = vcmp.eq.s32.totalorder %v467, %v756
      %vm786 = vcmp.eq.s32.totalorder %v468, %v756
      %vm787 = vcmp.eq.s32.totalorder %v469, %v756
      %vm788 = vcmp.eq.s32.totalorder %v470, %v756
      %v789 = vlaneseq
      %v790 = vshrl.u32 %v789, 7
      %v791 = vsub.s32 3, %v790
      %v792 = vrot.slane %v436, %v791
      %v793 = vsel %vm757, %v792, 0.0
      %v794 = vsel %vm758, %v792, 0.0
      %v795 = vsel %vm759, %v792, 0.0
      %v796 = vsel %vm760, %v792, 0.0
      %v797 = vsel %vm761, %v792, 0.0
      %v798 = vsel %vm762, %v792, 0.0
      %v799 = vsel %vm763, %v792, 0.0
      %v800 = vsel %vm764, %v792, 0.0
      %v801 = vsel %vm765, %v792, 0.0
      %v802 = vsel %vm766, %v792, 0.0
      %v803 = vsel %vm767, %v792, 0.0
      %v804 = vsel %vm768, %v792, 0.0
      %v805 = vsel %vm769, %v792, 0.0
      %v806 = vsel %vm770, %v792, 0.0
      %v807 = vsel %vm771, %v792, 0.0
      %v808 = vsel %vm772, %v792, 0.0
      %v809 = vsel %vm773, %v792, 0.0
      %v810 = vsel %vm774, %v792, 0.0
      %v811 = vsel %vm775, %v792, 0.0
      %v812 = vsel %vm776, %v792, 0.0
      %v813 = vsel %vm777, %v792, 0.0
      %v814 = vsel %vm778, %v792, 0.0
      %v815 = vsel %vm779, %v792, 0.0
      %v816 = vsel %vm780, %v792, 0.0
      %v817 = vsel %vm781, %v792, 0.0
      %v818 = vsel %vm782, %v792, 0.0
      %v819 = vsel %vm783, %v792, 0.0
      %v820 = vsel %vm784, %v792, 0.0
      %v821 = vsel %vm785, %v792, 0.0
      %v822 = vsel %vm786, %v792, 0.0
      %v823 = vsel %vm787, %v792, 0.0
      %v824 = vsel %vm788, %v792, 0.0
      %v825 = vadd.f32 %v721, %v793
      %v826 = vadd.f32 %v722, %v794
      %v827 = vadd.f32 %v723, %v795
      %v828 = vadd.f32 %v724, %v796
      %v829 = vadd.f32 %v725, %v797
      %v830 = vadd.f32 %v726, %v798
      %v831 = vadd.f32 %v727, %v799
      %v832 = vadd.f32 %v728, %v800
      %v833 = vadd.f32 %v729, %v801
      %v834 = vadd.f32 %v730, %v802
      %v835 = vadd.f32 %v731, %v803
      %v836 = vadd.f32 %v732, %v804
      %v837 = vadd.f32 %v733, %v805
      %v838 = vadd.f32 %v734, %v806
      %v839 = vadd.f32 %v735, %v807
      %v840 = vadd.f32 %v736, %v808
      %v841 = vadd.f32 %v737, %v809
      %v842 = vadd.f32 %v738, %v810
      %v843 = vadd.f32 %v739, %v811
      %v844 = vadd.f32 %v740, %v812
      %v845 = vadd.f32 %v741, %v813
      %v846 = vadd.f32 %v742, %v814
      %v847 = vadd.f32 %v743, %v815
      %v848 = vadd.f32 %v744, %v816
      %v849 = vadd.f32 %v745, %v817
      %v850 = vadd.f32 %v746, %v818
      %v851 = vadd.f32 %v747, %v819
      %v852 = vadd.f32 %v748, %v820
      %v853 = vadd.f32 %v749, %v821
      %v854 = vadd.f32 %v750, %v822
      %v855 = vadd.f32 %v751, %v823
      %v856 = vadd.f32 %v752, %v824
      // Predicated region
      $region49: #{_tag_offset_loss_device.1} parent=43 // pred_check
        %p857 = pneg %p427
      $region50: #{_tag_offset_loss_device.1} parent=43 // pred_check_branch
        %859 = sbr.rel (%p857) target = $region52
      $region51: #{_tag_offset_loss_device.1} parent=43 // pred_region
        %860 = vst [vmem:[#allocation2] sm:$0xff] 0.0
      $region52: #{_tag_offset_loss_device.1} parent=43 // pred_fallthru
        _
      %v861 = vld [vmem:[#allocation2] sm:$0xff]
      %862 = vmatprep.subr.mxu0 0.0
      %863 = vmatpush1.msra.mxu0 %v825
      %864 = vmatprep.subr.mxu0 0.0
      %865 = vmatpush1.msra.mxu0 %v826
      %866 = vmatprep.subr.mxu0 0.0
      %867 = vmatpush1.msra.mxu0 %v827
      %868 = vmatprep.subr.mxu0 0.0
      %869 = vmatpush1.msra.mxu0 %v828
      %870 = vmatprep.subr.mxu0 0.0
      %871 = vmatpush1.msra.mxu0 %v829
      %872 = vmatprep.subr.mxu0 0.0
      %873 = vmatpush1.msra.mxu0 %v830
      %874 = vmatprep.subr.mxu0 0.0
      %875 = vmatpush1.msra.mxu0 %v831
      %876 = vmatprep.subr.mxu0 0.0
      %877 = vmatpush1.msra.mxu0 %v832
      %878 = vmatprep.subr.mxu0 0.0
      %879 = vmatpush1.msra.mxu0 %v833
      %880 = vmatprep.subr.mxu0 0.0
      %881 = vmatpush1.msra.mxu0 %v834
      %882 = vmatprep.subr.mxu0 0.0
      %883 = vmatpush1.msra.mxu0 %v835
      %884 = vmatprep.subr.mxu0 0.0
      %885 = vmatpush1.msra.mxu0 %v836
      %886 = vmatprep.subr.mxu0 0.0
      %887 = vmatpush1.msra.mxu0 %v837
      %888 = vmatprep.subr.mxu0 0.0
      %889 = vmatpush1.msra.mxu0 %v838
      %890 = vmatprep.subr.mxu0 0.0
      %891 = vmatpush1.msra.mxu0 %v839
      %892 = vmatprep.subr.mxu0 0.0
      %893 = vmatpush1.msra.mxu0 %v840
      %894 = vmatprep.subr.mxu0 0.0
      %895 = vmatpush1.msra.mxu0 %v841
      %896 = vmatprep.subr.mxu0 0.0
      %897 = vmatpush1.msra.mxu0 %v842
      %898 = vmatprep.subr.mxu0 0.0
      %899 = vmatpush1.msra.mxu0 %v843
      %900 = vmatprep.subr.mxu0 0.0
      %901 = vmatpush1.msra.mxu0 %v844
      %902 = vmatprep.subr.mxu0 0.0
      %903 = vmatpush1.msra.mxu0 %v845
      %904 = vmatprep.subr.mxu0 0.0
      %905 = vmatpush1.msra.mxu0 %v846
      %906 = vmatprep.subr.mxu0 0.0
      %907 = vmatpush1.msra.mxu0 %v847
      %908 = vmatprep.subr.mxu0 0.0
      %909 = vmatpush1.msra.mxu0 %v848
      %910 = vmatprep.subr.mxu0 0.0
      %911 = vmatpush1.msra.mxu0 %v849
      %912 = vmatprep.subr.mxu0 0.0
      %913 = vmatpush1.msra.mxu0 %v850
      %914 = vmatprep.subr.mxu0 0.0
      %915 = vmatpush1.msra.mxu0 %v851
      %916 = vmatprep.subr.mxu0 0.0
      %917 = vmatpush1.msra.mxu0 %v852
      %918 = vmatprep.subr.mxu0 0.0
      %919 = vmatpush1.msra.mxu0 %v853
      %920 = vmatprep.subr.mxu0 0.0
      %921 = vmatpush1.msra.mxu0 %v854
      %922 = vmatprep.subr.mxu0 0.0
      %923 = vmatpush1.msra.mxu0 %v855
      %924 = vmatprep.subr.mxu0 0.0
      %925 = vmatpush1.msra.mxu0 %v856
      %926 = vmatprep.mubr.f32.mxu0 %v434
      %927 = vmatmul.mubr.f32.gmra.mrb[0].mxu0 %v433
      %v928 = vpop.f32.mrb[0].mxu0
      %v929 = vadd.f32 0.0, %v928
      %v930 = vpop.f32.mrb[0].mxu0
      %931 = vdwg.mxu0
      %v932 = vadd.f32 %v861, %v929
      %933 = vst [vmem:[#allocation2] sm:$0xff] %v932
      // Predicated region
      $region53: #{_tag_offset_loss_device.1} parent=43 // pred_check
        %p934 = pneg %p427
      $region54: #{_tag_offset_loss_device.1} parent=43 // pred_check_branch
        %936 = sbr.rel (%p934) target = $region56
      $region55: #{_tag_offset_loss_device.1} parent=43 // pred_region
        %v937 = vld [vmem:[#allocation2] sm:$0xff]
        %v938 = vlaneseq
        %v939 = vshrl.u32 %v938, 7
        %v940 = vsub.s32 4, %v939
        %v941 = vrot.slane %v435, %v940
        %vm942 = vcmp.eq.s32.totalorder %v439, %v941
        %v943 = vsel %vm942, 1, 0
        %v944 = vcvt.s32.f32 %v943
        %945 = vadd.xlane.f32.xlu0 %v944
        %v946 = vpop.xlane.xlu0 %945
        %vm947 = vcmp.gt.f32.partialorder %v946, 0.5
        %v948 = vsel %vm947, 1, 0
        %v949 = vcvt.s32.f32 %v948
        %v950 = vmax.f32 %v946, 1.0
        %v951 = vrcp.pop %v950
        %v952 = vmul.f32 1.0, %v951
        %v953 = vld [vmem:[%s420] sm:$0xff]
        %v954 = vld [vmem:[%s408] sm:$0xff]
        %v955 = vld [vmem:[%s414] sm:$0xff]
        %956 = vmatprep.subr.mxu0 0.0
        %957 = vmatpush1.xpose.msra.mxu0 %v937
        %958 = vmatprep.subr.mxu0 0.0
        %959 = vmatpush1.xpose.msra.mxu0 0.0
        %960 = vmatprep.subr.mxu0 0.0
        %961 = vmatpush1.xpose.msra.mxu0 0.0
        %962 = vmatprep.subr.mxu0 0.0
        %963 = vmatpush1.xpose.msra.mxu0 0.0
        %964 = vmatprep.subr.mxu0 0.0
        %965 = vmatpush1.xpose.msra.mxu0 0.0
        %966 = vmatprep.subr.mxu0 0.0
        %967 = vmatpush1.xpose.msra.mxu0 0.0
        %968 = vmatprep.subr.mxu0 0.0
        %969 = vmatpush1.xpose.msra.mxu0 0.0
        %970 = vmatprep.subr.mxu0 0.0
        %971 = vmatpush1.xpose.msra.mxu0 0.0
        %972 = vmatprep.subr.mxu0 0.0
        %973 = vmatpush1.xpose.msra.mxu0 0.0
        %974 = vmatprep.subr.mxu0 0.0
        %975 = vmatpush1.xpose.msra.mxu0 0.0
        %976 = vmatprep.subr.mxu0 0.0
        %977 = vmatpush1.xpose.msra.mxu0 0.0
        %978 = vmatprep.subr.mxu0 0.0
        %979 = vmatpush1.xpose.msra.mxu0 0.0
        %980 = vmatprep.subr.mxu0 0.0
        %981 = vmatpush1.xpose.msra.mxu0 0.0
        %982 = vmatprep.subr.mxu0 0.0
        %983 = vmatpush1.xpose.msra.mxu0 0.0
        %984 = vmatprep.subr.mxu0 0.0
        %985 = vmatpush1.xpose.msra.mxu0 0.0
        %986 = vmatprep.subr.mxu0 0.0
        %987 = vmatpush1.xpose.msra.mxu0 0.0
        %988 = vmatprep.subr.mxu0 0.0
        %989 = vmatpush1.xpose.msra.mxu0 0.0
        %990 = vmatprep.subr.mxu0 0.0
        %991 = vmatpush1.xpose.msra.mxu0 0.0
        %992 = vmatprep.subr.mxu0 0.0
        %993 = vmatpush1.xpose.msra.mxu0 0.0
        %994 = vmatprep.subr.mxu0 0.0
        %995 = vmatpush1.xpose.msra.mxu0 0.0
        %996 = vmatprep.subr.mxu0 0.0
        %997 = vmatpush1.xpose.msra.mxu0 0.0
        %998 = vmatprep.subr.mxu0 0.0
        %999 = vmatpush1.xpose.msra.mxu0 0.0
        %1000 = vmatprep.subr.mxu0 0.0
        %1001 = vmatpush1.xpose.msra.mxu0 0.0
        %1002 = vmatprep.subr.mxu0 0.0
        %1003 = vmatpush1.xpose.msra.mxu0 0.0
        %1004 = vmatprep.subr.mxu0 0.0
        %1005 = vmatpush1.xpose.msra.mxu0 0.0
        %1006 = vmatprep.subr.mxu0 0.0
        %1007 = vmatpush1.xpose.msra.mxu0 0.0
        %1008 = vmatprep.subr.mxu0 0.0
        %1009 = vmatpush1.xpose.msra.mxu0 0.0
        %1010 = vmatprep.subr.mxu0 0.0
        %1011 = vmatpush1.xpose.msra.mxu0 0.0
        %1012 = vmatprep.subr.mxu0 0.0
        %1013 = vmatpush1.xpose.msra.mxu0 0.0
        %1014 = vmatprep.subr.mxu0 0.0
        %1015 = vmatpush1.xpose.msra.mxu0 0.0
        %1016 = vmatprep.subr.mxu0 0.0
        %1017 = vmatpush1.xpose.msra.mxu0 0.0
        %1018 = vmatprep.subr.mxu0 0.0
        %1019 = vmatpush1.xpose.msra.mxu0 0.0
        %1020 = vmatprep.mubr.f32.mxu0 0.0
        %1021 = vmatmul.mubr.f32.gmra.mrb[0].mxu0 %v944
        %v1022 = vpop.f32.mrb[0].mxu0
        %v1023 = vadd.f32 0.0, %v1022
        %v1024 = vpop.f32.mrb[0].mxu0
        %1025 = vdwg.mxu0
        %v1026 = vmul.f32 %v1023, %v953
        %v1027 = vmul.f32 %v1026, %v952
        %v1028 = vmul.f32 %v937, %v937
        %1029 = vmatprep.subr.mxu0 0.0
        %1030 = vmatpush1.xpose.msra.mxu0 %v1028
        %1031 = vmatprep.subr.mxu0 0.0
        %1032 = vmatpush1.xpose.msra.mxu0 0.0
        %1033 = vmatprep.subr.mxu0 0.0
        %1034 = vmatpush1.xpose.msra.mxu0 0.0
        %1035 = vmatprep.subr.mxu0 0.0
        %1036 = vmatpush1.xpose.msra.mxu0 0.0
        %1037 = vmatprep.subr.mxu0 0.0
        %1038 = vmatpush1.xpose.msra.mxu0 0.0
        %1039 = vmatprep.subr.mxu0 0.0
        %1040 = vmatpush1.xpose.msra.mxu0 0.0
        %1041 = vmatprep.subr.mxu0 0.0
        %1042 = vmatpush1.xpose.msra.mxu0 0.0
        %1043 = vmatprep.subr.mxu0 0.0
        %1044 = vmatpush1.xpose.msra.mxu0 0.0
        %1045 = vmatprep.subr.mxu0 0.0
        %1046 = vmatpush1.xpose.msra.mxu0 0.0
        %1047 = vmatprep.subr.mxu0 0.0
        %1048 = vmatpush1.xpose.msra.mxu0 0.0
        %1049 = vmatprep.subr.mxu0 0.0
        %1050 = vmatpush1.xpose.msra.mxu0 0.0
        %1051 = vmatprep.subr.mxu0 0.0
        %1052 = vmatpush1.xpose.msra.mxu0 0.0
        %1053 = vmatprep.subr.mxu0 0.0
        %1054 = vmatpush1.xpose.msra.mxu0 0.0
        %1055 = vmatprep.subr.mxu0 0.0
        %1056 = vmatpush1.xpose.msra.mxu0 0.0
        %1057 = vmatprep.subr.mxu0 0.0
        %1058 = vmatpush1.xpose.msra.mxu0 0.0
        %1059 = vmatprep.subr.mxu0 0.0
        %1060 = vmatpush1.xpose.msra.mxu0 0.0
        %1061 = vmatprep.subr.mxu0 0.0
        %1062 = vmatpush1.xpose.msra.mxu0 0.0
        %1063 = vmatprep.subr.mxu0 0.0
        %1064 = vmatpush1.xpose.msra.mxu0 0.0
        %1065 = vmatprep.subr.mxu0 0.0
        %1066 = vmatpush1.xpose.msra.mxu0 0.0
        %1067 = vmatprep.subr.mxu0 0.0
        %1068 = vmatpush1.xpose.msra.mxu0 0.0
        %1069 = vmatprep.subr.mxu0 0.0
        %1070 = vmatpush1.xpose.msra.mxu0 0.0
        %1071 = vmatprep.subr.mxu0 0.0
        %1072 = vmatpush1.xpose.msra.mxu0 0.0
        %1073 = vmatprep.subr.mxu0 0.0
        %1074 = vmatpush1.xpose.msra.mxu0 0.0
        %1075 = vmatprep.subr.mxu0 0.0
        %1076 = vmatpush1.xpose.msra.mxu0 0.0
        %1077 = vmatprep.subr.mxu0 0.0
        %1078 = vmatpush1.xpose.msra.mxu0 0.0
        %1079 = vmatprep.subr.mxu0 0.0
        %1080 = vmatpush1.xpose.msra.mxu0 0.0
        %1081 = vmatprep.subr.mxu0 0.0
        %1082 = vmatpush1.xpose.msra.mxu0 0.0
        %1083 = vmatprep.subr.mxu0 0.0
        %1084 = vmatpush1.xpose.msra.mxu0 0.0
        %1085 = vmatprep.subr.mxu0 0.0
        %1086 = vmatpush1.xpose.msra.mxu0 0.0
        %1087 = vmatprep.subr.mxu0 0.0
        %1088 = vmatpush1.xpose.msra.mxu0 0.0
        %1089 = vmatprep.subr.mxu0 0.0
        %1090 = vmatpush1.xpose.msra.mxu0 0.0
        %1091 = vmatprep.subr.mxu0 0.0
        %1092 = vmatpush1.xpose.msra.mxu0 0.0
        %1093 = vmatprep.mubr.f32.mxu0 0.0
        %1094 = vmatmul.mubr.f32.gmra.mrb[0].mxu0 %v944
        %v1095 = vpop.f32.mrb[0].mxu0
        %v1096 = vadd.f32 0.0, %v1095
        %v1097 = vpop.f32.mrb[0].mxu0
        %1098 = vdwg.mxu0
        %v1099 = vmul.f32 %v1096, %v953
        %vm1100 = vcmask 64512
        %v1101 = vsel %vm1100, %v1099, 0.0
        %1102 = vadd.xlane.f32.xlu0 %v1101
        %v1103 = vpop.xlane.xlu0 %1102
        %v1104 = vmul.f32 %v1027, %v1027
        %v1105 = vsel %vm1100, %v1104, 0.0
        %1106 = vadd.xlane.f32.xlu0 %v1105
        %v1107 = vpop.xlane.xlu0 %1106
        %v1108 = vmul.f32 %v946, %v1107
        %v1109 = vsub.f32 %v1103, %v1108
        %v1110 = vmax.f32 %v1109, 0.0
        %v1111 = vmul.f32 %v1110, %v952
        %v1112 = vmul.f32 %v1111, %v954
        %v1113 = vmul.f32 %v1112, %v949
        %vm1114 = vcmask 7168
        %v1115 = vsel %vm1114, %v1113, 0.0
        %1116 = vadd.xlane.f32.xlu0 %v1115
        %v1117 = vpop.xlane.xlu0 %1116
        %v1118 = vrot.slane %v1117, 4
        %v1119 = vadd.f32 %v1117, %v1118
        %v1120 = vrot.slane %v1119, 2
        %v1121 = vadd.f32 %v1119, %v1120
        %v1122 = vrot.slane %v1121, 1
        %v1123 = vadd.f32 %v1121, %v1122
        %s1124 = vtos %v1123
        %v1126 = vsel %vm1100, %v1027, 0
        %1128 = vmatprep.subr.mxu0 0.0
        %1129 = vmatpush1.xpose.msra.mxu0 %v1126
        %1130 = vmatprep.subr.mxu0 0.0
        %1131 = vmatpush1.xpose.msra.mxu0 0.0
        %1132 = vmatprep.subr.mxu0 0.0
        %1133 = vmatpush1.xpose.msra.mxu0 0.0
        %1134 = vmatprep.subr.mxu0 0.0
        %1135 = vmatpush1.xpose.msra.mxu0 0.0
        %1136 = vmatprep.subr.mxu0 0.0
        %1137 = vmatpush1.xpose.msra.mxu0 0.0
        %1138 = vmatprep.subr.mxu0 0.0
        %1139 = vmatpush1.xpose.msra.mxu0 0.0
        %1140 = vmatprep.subr.mxu0 0.0
        %1141 = vmatpush1.xpose.msra.mxu0 0.0
        %1142 = vmatprep.subr.mxu0 0.0
        %1143 = vmatpush1.xpose.msra.mxu0 0.0
        %1144 = vmatprep.subr.mxu0 0.0
        %1145 = vmatpush1.xpose.msra.mxu0 0.0
        %1146 = vmatprep.subr.mxu0 0.0
        %1147 = vmatpush1.xpose.msra.mxu0 0.0
        %1148 = vmatprep.subr.mxu0 0.0
        %1149 = vmatpush1.xpose.msra.mxu0 0.0
        %1150 = vmatprep.subr.mxu0 0.0
        %1151 = vmatpush1.xpose.msra.mxu0 0.0
        %1152 = vmatprep.subr.mxu0 0.0
        %1153 = vmatpush1.xpose.msra.mxu0 0.0
        %1154 = vmatprep.subr.mxu0 0.0
        %1155 = vmatpush1.xpose.msra.mxu0 0.0
        %1156 = vmatprep.subr.mxu0 0.0
        %1157 = vmatpush1.xpose.msra.mxu0 0.0
        %1158 = vmatprep.subr.mxu0 0.0
        %1159 = vmatpush1.xpose.msra.mxu0 0.0
        %1160 = vmatprep.subr.mxu0 0.0
        %1161 = vmatpush1.xpose.msra.mxu0 0.0
        %1162 = vmatprep.subr.mxu0 0.0
        %1163 = vmatpush1.xpose.msra.mxu0 0.0
        %1164 = vmatprep.subr.mxu0 0.0
        %1165 = vmatpush1.xpose.msra.mxu0 0.0
        %1166 = vmatprep.subr.mxu0 0.0
        %1167 = vmatpush1.xpose.msra.mxu0 0.0
        %1168 = vmatprep.subr.mxu0 0.0
        %1169 = vmatpush1.xpose.msra.mxu0 0.0
        %1170 = vmatprep.subr.mxu0 0.0
        %1171 = vmatpush1.xpose.msra.mxu0 0.0
        %1172 = vmatprep.subr.mxu0 0.0
        %1173 = vmatpush1.xpose.msra.mxu0 0.0
        %1174 = vmatprep.subr.mxu0 0.0
        %1175 = vmatpush1.xpose.msra.mxu0 0.0
        %1176 = vmatprep.subr.mxu0 0.0
        %1177 = vmatpush1.xpose.msra.mxu0 0.0
        %1178 = vmatprep.subr.mxu0 0.0
        %1179 = vmatpush1.xpose.msra.mxu0 0.0
        %1180 = vmatprep.subr.mxu0 0.0
        %1181 = vmatpush1.xpose.msra.mxu0 0.0
        %1182 = vmatprep.subr.mxu0 0.0
        %1183 = vmatpush1.xpose.msra.mxu0 0.0
        %1184 = vmatprep.subr.mxu0 0.0
        %1185 = vmatpush1.xpose.msra.mxu0 0.0
        %1186 = vmatprep.subr.mxu0 0.0
        %1187 = vmatpush1.xpose.msra.mxu0 0.0
        %1188 = vmatprep.subr.mxu0 0.0
        %1189 = vmatpush1.xpose.msra.mxu0 0.0
        %1190 = vmatprep.subr.mxu0 0.0
        %1191 = vmatpush1.xpose.msra.mxu0 0.0
        %1192 = vmatprep.mubr.f32.mxu0 0.0
        %1193 = vmatmul.mubr.f32.gmra.mrb[0].mxu0 %v1126
        %v1194 = vpop.f32.mrb[0].mxu0
        %v1195 = vadd.f32 0.0, %v1194
        %v1196 = vpop.f32.mrb[0].mxu0
        %1197 = vdwg.mxu0
        %1198 = vxpose.xlu0.b32.start [1/16] %v1107, 128
        %1199 = vxpose.xlu0.b32.cont [2/16] 0.0, 128
        %1200 = vxpose.xlu0.b32.cont [3/16] 0.0, 128
        %1201 = vxpose.xlu0.b32.cont [4/16] 0.0, 128
        %1202 = vxpose.xlu0.b32.cont [5/16] 0.0, 128
        %1203 = vxpose.xlu0.b32.cont [6/16] 0.0, 128
        %1204 = vxpose.xlu0.b32.cont [7/16] 0.0, 128
        %1205 = vxpose.xlu0.b32.cont [8/16] 0.0, 128
        %1206 = vxpose.xlu0.b32.cont [9/16] 0.0, 128
        %1207 = vxpose.xlu0.b32.cont [10/16] 0.0, 128
        %1208 = vxpose.xlu0.b32.cont [11/16] 0.0, 128
        %1209 = vxpose.xlu0.b32.cont [12/16] 0.0, 128
        %1210 = vxpose.xlu0.b32.cont [13/16] 0.0, 128
        %1211 = vxpose.xlu0.b32.cont [14/16] 0.0, 128
        %1212 = vxpose.xlu0.b32.cont [15/16] 0.0, 128
        %1213 = vxpose.xlu0.b32.end [16/16] 0.0, 128
        %v1214 = vpop.trf.xlu0
        %v1215 = vpop.trf.xlu0
        %v1216 = vpop.trf.xlu0
        %v1217 = vpop.trf.xlu0
        %v1218 = vpop.trf.xlu0
        %v1219 = vpop.trf.xlu0
        %v1220 = vpop.trf.xlu0
        %v1221 = vpop.trf.xlu0
        %v1222 = vpop.trf.xlu0
        %v1223 = vpop.trf.xlu0
        %v1224 = vpop.trf.xlu0
        %v1225 = vpop.trf.xlu0
        %v1226 = vpop.trf.xlu0
        %v1227 = vpop.trf.xlu0
        %v1228 = vpop.trf.xlu0
        %v1229 = vpop.trf.xlu0
        %v1230 = vlaneseq
        %v1231 = vshrl.u32 %v1230, 7
        %v1232 = vsub.s32 0, %v1231
        %v1233 = vrot.slane %v1214, %v1232
        %v1234 = vadd.f32 %v1107, %v1233
        %v1235 = vmul.f32 %v1195, 2.0
        %v1236 = vsub.f32 %v1234, %v1235
        %v1237 = vmax.f32 %v1236, 0.0
        %v1239 = vsel %vm1100, %v953, 0
        %1241 = vmatprep.subr.mxu0 0.0
        %1242 = vmatpush1.xpose.msra.mxu0 %v1239
        %1243 = vmatprep.subr.mxu0 0.0
        %1244 = vmatpush1.xpose.msra.mxu0 0.0
        %1245 = vmatprep.subr.mxu0 0.0
        %1246 = vmatpush1.xpose.msra.mxu0 0.0
        %1247 = vmatprep.subr.mxu0 0.0
        %1248 = vmatpush1.xpose.msra.mxu0 0.0
        %1249 = vmatprep.subr.mxu0 0.0
        %1250 = vmatpush1.xpose.msra.mxu0 0.0
        %1251 = vmatprep.subr.mxu0 0.0
        %1252 = vmatpush1.xpose.msra.mxu0 0.0
        %1253 = vmatprep.subr.mxu0 0.0
        %1254 = vmatpush1.xpose.msra.mxu0 0.0
        %1255 = vmatprep.subr.mxu0 0.0
        %1256 = vmatpush1.xpose.msra.mxu0 0.0
        %1257 = vmatprep.subr.mxu0 0.0
        %1258 = vmatpush1.xpose.msra.mxu0 0.0
        %1259 = vmatprep.subr.mxu0 0.0
        %1260 = vmatpush1.xpose.msra.mxu0 0.0
        %1261 = vmatprep.subr.mxu0 0.0
        %1262 = vmatpush1.xpose.msra.mxu0 0.0
        %1263 = vmatprep.subr.mxu0 0.0
        %1264 = vmatpush1.xpose.msra.mxu0 0.0
        %1265 = vmatprep.subr.mxu0 0.0
        %1266 = vmatpush1.xpose.msra.mxu0 0.0
        %1267 = vmatprep.subr.mxu0 0.0
        %1268 = vmatpush1.xpose.msra.mxu0 0.0
        %1269 = vmatprep.subr.mxu0 0.0
        %1270 = vmatpush1.xpose.msra.mxu0 0.0
        %1271 = vmatprep.subr.mxu0 0.0
        %1272 = vmatpush1.xpose.msra.mxu0 0.0
        %1273 = vmatprep.subr.mxu0 0.0
        %1274 = vmatpush1.xpose.msra.mxu0 0.0
        %1275 = vmatprep.subr.mxu0 0.0
        %1276 = vmatpush1.xpose.msra.mxu0 0.0
        %1277 = vmatprep.subr.mxu0 0.0
        %1278 = vmatpush1.xpose.msra.mxu0 0.0
        %1279 = vmatprep.subr.mxu0 0.0
        %1280 = vmatpush1.xpose.msra.mxu0 0.0
        %1281 = vmatprep.subr.mxu0 0.0
        %1282 = vmatpush1.xpose.msra.mxu0 0.0
        %1283 = vmatprep.subr.mxu0 0.0
        %1284 = vmatpush1.xpose.msra.mxu0 0.0
        %1285 = vmatprep.subr.mxu0 0.0
        %1286 = vmatpush1.xpose.msra.mxu0 0.0
        %1287 = vmatprep.subr.mxu0 0.0
        %1288 = vmatpush1.xpose.msra.mxu0 0.0
        %1289 = vmatprep.subr.mxu0 0.0
        %1290 = vmatpush1.xpose.msra.mxu0 0.0
        %1291 = vmatprep.subr.mxu0 0.0
        %1292 = vmatpush1.xpose.msra.mxu0 0.0
        %1293 = vmatprep.subr.mxu0 0.0
        %1294 = vmatpush1.xpose.msra.mxu0 0.0
        %1295 = vmatprep.subr.mxu0 0.0
        %1296 = vmatpush1.xpose.msra.mxu0 0.0
        %1297 = vmatprep.subr.mxu0 0.0
        %1298 = vmatpush1.xpose.msra.mxu0 0.0
        %1299 = vmatprep.subr.mxu0 0.0
        %1300 = vmatpush1.xpose.msra.mxu0 0.0
        %1301 = vmatprep.subr.mxu0 0.0
        %1302 = vmatpush1.xpose.msra.mxu0 0.0
        %1303 = vmatprep.subr.mxu0 0.0
        %1304 = vmatpush1.xpose.msra.mxu0 0.0
        %1305 = vmatprep.mubr.f32.mxu0 0.0
        %1306 = vmatmul.mubr.f32.gmra.mrb[0].mxu0 %v1239
        %v1307 = vpop.f32.mrb[0].mxu0
        %v1308 = vadd.f32 0.0, %v1307
        %v1309 = vpop.f32.mrb[0].mxu0
        %1310 = vdwg.mxu0
        %vm1311 = vcmp.gt.f32.partialorder %v1308, 0.5
        %v1312 = vsel %vm1311, 1, 0
        %v1313 = vcvt.s32.f32 %v1312
        %v1314 = vlaneseq
        %v1315 = vand.u32 %v1314, 127
        %vm1316 = vcmp.ne.s32.totalorder %v439, %v1315
        %v1317 = vsel %vm1316, 1, 0
        %v1318 = vcvt.s32.f32 %v1317
        %v1319 = vmul.f32 %v1313, %v1318
        %1320 = vxpose.xlu0.b32.start [1/16] %v949, 128
        %1321 = vxpose.xlu0.b32.cont [2/16] 0.0, 128
        %1322 = vxpose.xlu0.b32.cont [3/16] 0.0, 128
        %1323 = vxpose.xlu0.b32.cont [4/16] 0.0, 128
        %1324 = vxpose.xlu0.b32.cont [5/16] 0.0, 128
        %1325 = vxpose.xlu0.b32.cont [6/16] 0.0, 128
        %1326 = vxpose.xlu0.b32.cont [7/16] 0.0, 128
        %1327 = vxpose.xlu0.b32.cont [8/16] 0.0, 128
        %1328 = vxpose.xlu0.b32.cont [9/16] 0.0, 128
        %1329 = vxpose.xlu0.b32.cont [10/16] 0.0, 128
        %1330 = vxpose.xlu0.b32.cont [11/16] 0.0, 128
        %1331 = vxpose.xlu0.b32.cont [12/16] 0.0, 128
        %1332 = vxpose.xlu0.b32.cont [13/16] 0.0, 128
        %1333 = vxpose.xlu0.b32.cont [14/16] 0.0, 128
        %1334 = vxpose.xlu0.b32.cont [15/16] 0.0, 128
        %1335 = vxpose.xlu0.b32.end [16/16] 0.0, 128
        %v1336 = vpop.trf.xlu0
        %v1337 = vpop.trf.xlu0
        %v1338 = vpop.trf.xlu0
        %v1339 = vpop.trf.xlu0
        %v1340 = vpop.trf.xlu0
        %v1341 = vpop.trf.xlu0
        %v1342 = vpop.trf.xlu0
        %v1343 = vpop.trf.xlu0
        %v1344 = vpop.trf.xlu0
        %v1345 = vpop.trf.xlu0
        %v1346 = vpop.trf.xlu0
        %v1347 = vpop.trf.xlu0
        %v1348 = vpop.trf.xlu0
        %v1349 = vpop.trf.xlu0
        %v1350 = vpop.trf.xlu0
        %v1351 = vpop.trf.xlu0
        %v1352 = vlaneseq
        %v1353 = vshrl.u32 %v1352, 7
        %v1354 = vsub.s32 0, %v1353
        %v1355 = vrot.slane %v1336, %v1354
        %v1356 = vmul.f32 %v949, %v1355
        %v1357 = vmul.f32 %v1319, %v1356
        %v1358 = vsub.f32 0.0, %v1237
        %v1359 = vmul.f32 %v1358, 1.442695
        %v1360 = vpow.pop %v1359
        %v1361 = vmul.f32 %v1360, %v1357
        %1363 = vset.pattern.permute.xlu0 0
        %1364 = vperm.xlu0 %1363, %v955
        %v1365 = vpop.permute.xlu0 %1364
        %v1367 = vmul.f32 %v1361, %v1365
        %v1368 = vsel %vm1100, %v1367, 0.0
        %1369 = vadd.xlane.f32.xlu0 %v1368
        %v1370 = vpop.xlane.xlu0 %1369
        %v1371 = vrot.slane %v1370, 4
        %v1372 = vadd.f32 %v1370, %v1371
        %v1373 = vrot.slane %v1372, 2
        %v1374 = vadd.f32 %v1372, %v1373
        %v1375 = vrot.slane %v1374, 1
        %v1376 = vadd.f32 %v1374, %v1375
        %s1377 = vtos %v1376
        %v1378 = vld [vmem:[%s425] sm:$0xff]
        %s1379 = sadd.f32 %s1124, %s1377
        %v1380 = vstv %s1379
        %v1381 = vadd.f32 %v1378, %v1380
        %1382 = vst [vmem:[%s425] sm:$0xff] %v1381
      $region56: #{_tag_offset_loss_device.1} parent=43 // pred_fallthru
        _
      %p1383 = scmp.lt.s32.totalorder %s29, 1
      %s1384 = scalar_select %p1383, %s29, 1
      %s1385 = smul.addr %s1384, 8
      %s1386 = scalar_lea.vmem %s7, %s1385
      // Predicated region
      $region57: #{_tag_offset_loss_device.1} parent=43 // pred_check
        %p1387 = pneg %p233
      $region58: #{_tag_offset_loss_device.1} parent=43 // pred_check_branch
        %1389 = sbr.rel (%p1387) target = $region60
      $region59: #{_tag_offset_loss_device.1} parent=43 // pred_region
        _
      $region60: #{_tag_offset_loss_device.1} parent=43 // pred_fallthru
        _
    $region44: #{_tag_offset_loss_device.1} parent=5 // pred_fallthru
      _
    %p1390 = scmp.le.s32.totalorder 2, %s19
    // Predicated region
    $region61: #{_tag_offset_loss_device.1} parent=5 // pred_check
      %p1391 = pneg %p1390
    $region62: #{_tag_offset_loss_device.1} parent=5 // pred_check_branch
      %1393 = sbr.rel (%p1391) target = $region64
    $region63: #{_tag_offset_loss_device.1} parent=5 // pred_region
      %s1394 = ssub.s32 %s19, 2
      // Predicated region
      $region65: #{_tag_offset_loss_device.1} parent=63 // pred_check
        %p1395 = pneg %p239
      $region66: #{_tag_offset_loss_device.1} parent=63 // pred_check_branch
        %1397 = sbr.rel (%p1395) target = $region68
      $region67: #{_tag_offset_loss_device.1} parent=63 // pred_region
        %p1398 = scmp.lt.s32.totalorder %s32, 1
        %s1399 = scalar_select %p1398, %s32, 1
        %s1400 = smul.addr %s1399, 8
        %s1401 = scalar_lea.vmem %s7, %s1400
      $region68: #{_tag_offset_loss_device.1} parent=63 // pred_fallthru
        _
    $region64: #{_tag_offset_loss_device.1} parent=5 // pred_fallthru
      _
  $region6: #{_tag_offset_loss_device.1} parent=0 // loop_footer
    %s23 = sadd.s32 1, %s19
  $region7: #{_tag_offset_loss_device.1} parent=0 // loop_footer_branch
    %18 = sbr.rel target = $region3
  $region8: #{_tag_offset_loss_device.1} parent=0 // loop_exit
    _

</llo_original>
